<compile_context>
chip_gen: v5e
topology: v5e:2x2
jax: 0.10.0
libtpu: 0.0.40
codegen_flags: <defaults>
</compile_context>

<pallas_src>
import functools
import math

import jax
import jax.numpy as jnp
from jax import lax
from jax.experimental import pallas as pl
from jax.experimental.pallas import tpu as pltpu


def _lstm_kernel(x_ref, wih0_ref, wih_ref, whh_ref, b_ref, h0_ref, c0_ref,
                 y_ref, hn_ref, cn_ref, pre_ref,
                 *, n_layers, n_hidden, seq_len, batch):
    """Multi-layer LSTM forward sweep, fully resident in VMEM.

    x_ref    : (T*B, 1)        layer-0 input (time-major rows, row = t*B + b)
    wih0_ref : (1, 4H)         layer-0 input->gates weight row (transposed)
    wih_ref  : (max(L-1,1), H, 4H) input->gates weights for layers 1..L-1
    whh_ref  : (L, H, 4H)      hidden->gates weights (transposed)
    b_ref    : (L, 1, 4H)      b_ih + b_hh
    h0/c0    : (L, B, H)
    y_ref    : (T*B, H)        top-layer output; also the inter-layer buffer
    hn/cn    : (L, B, H)
    pre_ref  : (T*B, 4H) VMEM scratch: precomputed input projections
    """
    H = n_hidden
    B = batch

    for layer in range(n_layers):                       # static unroll over layers
        bias = b_ref[layer]                             # (1, 4H)

        # ---- Hoisted input projection for ALL timesteps (out of the serial chain)
        if layer == 0:
            # input_size == 1: projection is a broadcast-scale on the VPU.
            pre_ref[...] = x_ref[...] * wih0_ref[...] + bias
        else:
            pre_ref[...] = (
                jnp.dot(y_ref[...], wih_ref[layer - 1],
                        preferred_element_type=jnp.float32) + bias)

        whh = whh_ref[layer]                            # (H, 4H)
        h = h0_ref[layer]                               # (B, H)
        c = c0_ref[layer]                               # (B, H)

        # ---- Serial recurrence, fully unrolled (seq_len static & small) ----
        for t in range(seq_len):
            row = t * B
            gates = pre_ref[pl.ds(row, B), :] + jnp.dot(
                h, whh, preferred_element_type=jnp.float32)      # (B, 4H)
            # One sigmoid + one tanh over the full lane-dense (B, 4H) vreg,
            # then slice the gates out.
            sig = jax.nn.sigmoid(gates)
            th = jnp.tanh(gates)
            i = sig[:, 0 * H:1 * H]
            f = sig[:, 1 * H:2 * H]
            g = th[:, 2 * H:3 * H]
            o = sig[:, 3 * H:4 * H]
            c = f * c + i * g
            h = o * jnp.tanh(c)
            y_ref[pl.ds(row, B), :] = h

        hn_ref[layer] = h
        cn_ref[layer] = c

    # TODO(synk): nn.Dropout (and inter-layer LSTM dropout) is identity in eval
    # mode; training-mode stochastic dropout not applied here.


def lstm_forward(x, params, h0, c0, *, n_layers, n_hidden):
    """x: (T, B, 1) float32. Returns (out (T,B,H), (h_n, c_n) each (L,B,H))."""
    T, B, in_dim = x.shape
    assert in_dim == 1
    H = n_hidden
    L = n_layers

    # Time-major rows: row index = t*B + b (pure metadata reshape, outside kernel).
    x2d = x.reshape(T * B, 1)

    # Layer-0 input weight is (4H, 1) -> a single (1, 4H) row; no padding needed.
    wih0 = params[0]["w_ih"].T                                   # (1, 4H)
    if L > 1:
        wih_rest = jnp.stack([params[l]["w_ih"].T for l in range(1, L)])  # (L-1,H,4H)
    else:
        wih_rest = jnp.zeros((1, H, 4 * H), jnp.float32)         # unused dummy
    whh = jnp.stack([params[l]["w_hh"].T for l in range(L)])     # (L, H, 4H)
    b = jnp.stack([(params[l]["b_ih"] + params[l]["b_hh"])[None, :]
                   for l in range(L)])                           # (L, 1, 4H)

    kernel = functools.partial(_lstm_kernel, n_layers=L, n_hidden=H,
                               seq_len=T, batch=B)

    vmem = pl.BlockSpec(memory_space=pltpu.MemorySpace.VMEM)
    y2d, hn, cn = pl.pallas_call(
        kernel,
        out_shape=(
            jax.ShapeDtypeStruct((T * B, H), jnp.float32),
            jax.ShapeDtypeStruct((L, B, H), jnp.float32),
            jax.ShapeDtypeStruct((L, B, H), jnp.float32),
        ),
        in_specs=[vmem] * 7,
        out_specs=(vmem, vmem, vmem),
        scratch_shapes=[pltpu.VMEM((T * B, 4 * H), jnp.float32)],
        input_output_aliases={5: 1, 6: 2},   # h0 -> h_n, c0 -> c_n in place
    )(x2d, wih0, wih_rest, whh, b, h0, c0)

    # Dropout on r_output (eval mode -> identity).
    return y2d.reshape(T, B, H), (hn, cn)


def make_params(key, n_layers, n_hidden, input_size=1):
    """Deterministic init matching nn.LSTM's U(-1/sqrt(H), 1/sqrt(H))."""
    H = n_hidden
    bound = 1.0 / math.sqrt(H)
    params = []
    for l in range(n_layers):
        in_dim = input_size if l == 0 else H
        key, k1, k2, k3, k4 = jax.random.split(key, 5)
        w_ih = jax.random.uniform(k1, (4 * H, in_dim), jnp.float32, -bound, bound)
        w_hh = jax.random.uniform(k2, (4 * H, H), jnp.float32, -bound, bound)
        b_ih = jax.random.uniform(k3, (4 * H,), jnp.float32, -bound, bound)
        b_hh = jax.random.uniform(k4, (4 * H,), jnp.float32, -bound, bound)
        params.append(dict(w_ih=w_ih, w_hh=w_hh, b_ih=b_ih, b_hh=b_hh))
    return params


def lstm_reference(x, params, h0, c0, *, n_layers, n_hidden):
    """Pure-JAX reference (lax.scan) for correctness checking."""
    H = n_hidden
    inp = x  # (T, B, in)
    hs, cs = [], []
    for l in range(n_layers):
        w_ih = params[l]["w_ih"]
        w_hh = params[l]["w_hh"]
        b = params[l]["b_ih"] + params[l]["b_hh"]

        def cell(carry, xt, w_ih=w_ih, w_hh=w_hh, b=b):
            h, c = carry
            gates = xt @ w_ih.T + h @ w_hh.T + b
            i = jax.nn.sigmoid(gates[:, 0 * H:1 * H])
            f = jax.nn.sigmoid(gates[:, 1 * H:2 * H])
            g = jnp.tanh(gates[:, 2 * H:3 * H])
            o = jax.nn.sigmoid(gates[:, 3 * H:4 * H])
            c = f * c + i * g
            h = o * jnp.tanh(c)
            return (h, c), h

        (hf, cf), ys = lax.scan(cell, (h0[l], c0[l]), inp)
        inp = ys
        hs.append(hf)
        cs.append(cf)
    return inp, (jnp.stack(hs), jnp.stack(cs))


if __name__ == "__main__":
    # Small shapes consistent with the module: seq=8, batch=2, input_size=1.
    T, B, IN = 8, 2, 1
    N_HIDDEN, N_LAYERS = 32, 2

    key = jax.random.PRNGKey(0)
    key, kx = jax.random.split(key)
    x = jax.random.normal(kx, (T, B, IN), jnp.float32)
    params = make_params(key, N_LAYERS, N_HIDDEN, IN)

    # init_hidden(batch_size): zeros of shape (n_layers, batch, n_hidden)
    h0 = jnp.zeros((N_LAYERS, B, N_HIDDEN), jnp.float32)
    c0 = jnp.zeros((N_LAYERS, B, N_HIDDEN), jnp.float32)

    # Reference first (h0/c0 may be aliased/consumed by the kernel outputs).
    out_ref, (hn_ref, cn_ref) = lstm_reference(
        x, params, h0, c0, n_layers=N_LAYERS, n_hidden=N_HIDDEN)

    out, (hn, cn) = lstm_forward(x, params, h0, c0,
                                 n_layers=N_LAYERS, n_hidden=N_HIDDEN)
    jax.block_until_ready((out, hn, cn))

    assert jnp.allclose(out, out_ref, atol=1e-5, rtol=1e-5)
    assert jnp.allclose(hn, hn_ref, atol=1e-5, rtol=1e-5)
    assert jnp.allclose(cn, cn_ref, atol=1e-5, rtol=1e-5)

    print("KERNEL_OK")
</pallas_src>

<mosaic_0001>
module attributes {stable_mosaic.version = 11 : i64} {
  func.func @_lstm_kernel(%arg0: memref<16x1xf32, #tpu.memory_space<vmem>>, %arg1: memref<1x128xf32, #tpu.memory_space<vmem>>, %arg2: memref<1x32x128xf32, #tpu.memory_space<vmem>>, %arg3: memref<2x32x128xf32, #tpu.memory_space<vmem>>, %arg4: memref<2x1x128xf32, #tpu.memory_space<vmem>>, %arg5: memref<2x2x32xf32, #tpu.memory_space<vmem>>, %arg6: memref<2x2x32xf32, #tpu.memory_space<vmem>>, %arg7: memref<16x32xf32, #tpu.memory_space<vmem>>, %arg8: memref<2x2x32xf32, #tpu.memory_space<vmem>>, %arg9: memref<2x2x32xf32, #tpu.memory_space<vmem>>, %arg10: memref<16x128xf32, #tpu.memory_space<vmem>>) attributes {dimension_semantics = [], scalar_prefetch = 0 : i64, scratch_operands = 1 : i64, tpu.core_type = #tpu.core_type<tc>} {
    %c0 = arith.constant 0 : index
    %c0_0 = arith.constant 0 : index
    %c0_1 = arith.constant 0 : index
    %0 = vector.load %arg4[%c0, %c0_0, %c0_1] : memref<2x1x128xf32, #tpu.memory_space<vmem>>, vector<1x1x128xf32>
    %1 = vector.shape_cast %0 : vector<1x1x128xf32> to vector<1x128xf32>
    %c0_2 = arith.constant 0 : index
    %c0_3 = arith.constant 0 : index
    %2 = vector.load %arg0[%c0_2, %c0_3] : memref<16x1xf32, #tpu.memory_space<vmem>>, vector<16x1xf32>
    %c0_4 = arith.constant 0 : index
    %c0_5 = arith.constant 0 : index
    %3 = vector.load %arg1[%c0_4, %c0_5] : memref<1x128xf32, #tpu.memory_space<vmem>>, vector<1x128xf32>
    %4 = vector.broadcast %2 : vector<16x1xf32> to vector<16x128xf32>
    %5 = vector.broadcast %3 : vector<1x128xf32> to vector<16x128xf32>
    %6 = arith.mulf %4, %5 : vector<16x128xf32>
    %7 = vector.broadcast %1 : vector<1x128xf32> to vector<16x128xf32>
    %8 = arith.addf %6, %7 : vector<16x128xf32>
    %c0_6 = arith.constant 0 : index
    %c0_7 = arith.constant 0 : index
    %9 = vector.load %arg10[%c0_6, %c0_7] : memref<16x128xf32, #tpu.memory_space<vmem>>, vector<16x128xf32>
    tpu.vector_store %arg10[%c0_6, %c0_7], %8 {strides = array<i32>} : memref<16x128xf32, #tpu.memory_space<vmem>>, vector<16x128xf32>,
    %c0_8 = arith.constant 0 : index
    %c0_9 = arith.constant 0 : index
    %c0_10 = arith.constant 0 : index
    %10 = vector.load %arg3[%c0_8, %c0_9, %c0_10] : memref<2x32x128xf32, #tpu.memory_space<vmem>>, vector<1x32x128xf32>
    %11 = vector.shape_cast %10 : vector<1x32x128xf32> to vector<32x128xf32>
    %c0_11 = arith.constant 0 : index
    %c0_12 = arith.constant 0 : index
    %c0_13 = arith.constant 0 : index
    %12 = vector.load %arg5[%c0_11, %c0_12, %c0_13] : memref<2x2x32xf32, #tpu.memory_space<vmem>>, vector<1x2x32xf32>
    %13 = vector.shape_cast %12 : vector<1x2x32xf32> to vector<2x32xf32>
    %c0_14 = arith.constant 0 : index
    %c0_15 = arith.constant 0 : index
    %c0_16 = arith.constant 0 : index
    %14 = vector.load %arg6[%c0_14, %c0_15, %c0_16] : memref<2x2x32xf32, #tpu.memory_space<vmem>>, vector<1x2x32xf32>
    %15 = vector.shape_cast %14 : vector<1x2x32xf32> to vector<2x32xf32>
    %c0_17 = arith.constant 0 : index
    %c0_18 = arith.constant 0 : index
    %16 = vector.load %arg10[%c0_17, %c0_18] : memref<16x128xf32, #tpu.memory_space<vmem>>, vector<2x128xf32>
    %cst = arith.constant dense<0.000000e+00> : vector<2x128xf32>
    %17 = tpu.matmul %13, %11, %cst {dimension_numbers = #tpu.dot_dimension_numbers<[1], [0], [0], [1], [0, 0, 1, 1], [], []>} : vector<2x32xf32>, vector<32x128xf32>, vector<2x128xf32> -> vector<2x128xf32>
    %18 = arith.addf %16, %17 : vector<2x128xf32>
    %19 = arith.negf %18 : vector<2x128xf32>
    %20 = math.exp %19 : vector<2x128xf32>
    %cst_19 = arith.constant 1.000000e+00 : f32
    %21 = vector.broadcast %cst_19 : f32 to vector<2x128xf32>
    %22 = arith.addf %21, %20 : vector<2x128xf32>
    %23 = arith.divf %21, %22 : vector<2x128xf32>
    %24 = math.tanh %18 : vector<2x128xf32>
    %25 = vector.extract_strided_slice %23 {offsets = [0, 0], sizes = [2, 32], strides = [1, 1]} : vector<2x128xf32> to vector<2x32xf32>
    %26 = vector.extract_strided_slice %23 {offsets = [0, 32], sizes = [2, 32], strides = [1, 1]} : vector<2x128xf32> to vector<2x32xf32>
    %27 = vector.extract_strided_slice %24 {offsets = [0, 64], sizes = [2, 32], strides = [1, 1]} : vector<2x128xf32> to vector<2x32xf32>
    %28 = vector.extract_strided_slice %23 {offsets = [0, 96], sizes = [2, 32], strides = [1, 1]} : vector<2x128xf32> to vector<2x32xf32>
    %29 = arith.mulf %26, %15 : vector<2x32xf32>
    %30 = arith.mulf %25, %27 : vector<2x32xf32>
    %31 = arith.addf %29, %30 : vector<2x32xf32>
    %32 = math.tanh %31 : vector<2x32xf32>
    %33 = arith.mulf %28, %32 : vector<2x32xf32>
    %c0_20 = arith.constant 0 : index
    %c0_21 = arith.constant 0 : index
    %34 = vector.load %arg7[%c0_20, %c0_21] : memref<16x32xf32, #tpu.memory_space<vmem>>, vector<2x32xf32>
    tpu.vector_store %arg7[%c0_20, %c0_21], %33 {strides = array<i32>} : memref<16x32xf32, #tpu.memory_space<vmem>>, vector<2x32xf32>,
    %c2 = arith.constant 2 : index
    %c0_22 = arith.constant 0 : index
    %35 = vector.load %arg10[%c2, %c0_22] : memref<16x128xf32, #tpu.memory_space<vmem>>, vector<2x128xf32>
    %cst_23 = arith.constant dense<0.000000e+00> : vector<2x128xf32>
    %36 = tpu.matmul %33, %11, %cst_23 {dimension_numbers = #tpu.dot_dimension_numbers<[1], [0], [0], [1], [0, 0, 1, 1], [], []>} : vector<2x32xf32>, vector<32x128xf32>, vector<2x128xf32> -> vector<2x128xf32>
    %37 = arith.addf %35, %36 : vector<2x128xf32>
    %38 = arith.negf %37 : vector<2x128xf32>
    %39 = math.exp %38 : vector<2x128xf32>
    %cst_24 = arith.constant 1.000000e+00 : f32
    %40 = vector.broadcast %cst_24 : f32 to vector<2x128xf32>
    %41 = arith.addf %40, %39 : vector<2x128xf32>
    %42 = arith.divf %40, %41 : vector<2x128xf32>
    %43 = math.tanh %37 : vector<2x128xf32>
    %44 = vector.extract_strided_slice %42 {offsets = [0, 0], sizes = [2, 32], strides = [1, 1]} : vector<2x128xf32> to vector<2x32xf32>
    %45 = vector.extract_strided_slice %42 {offsets = [0, 32], sizes = [2, 32], strides = [1, 1]} : vector<2x128xf32> to vector<2x32xf32>
    %46 = vector.extract_strided_slice %43 {offsets = [0, 64], sizes = [2, 32], strides = [1, 1]} : vector<2x128xf32> to vector<2x32xf32>
    %47 = vector.extract_strided_slice %42 {offsets = [0, 96], sizes = [2, 32], strides = [1, 1]} : vector<2x128xf32> to vector<2x32xf32>
    %48 = arith.mulf %45, %31 : vector<2x32xf32>
    %49 = arith.mulf %44, %46 : vector<2x32xf32>
    %50 = arith.addf %48, %49 : vector<2x32xf32>
    %51 = math.tanh %50 : vector<2x32xf32>
    %52 = arith.mulf %47, %51 : vector<2x32xf32>
    %c2_25 = arith.constant 2 : index
    %c0_26 = arith.constant 0 : index
    %53 = vector.load %arg7[%c2_25, %c0_26] : memref<16x32xf32, #tpu.memory_space<vmem>>, vector<2x32xf32>
    tpu.vector_store %arg7[%c2_25, %c0_26], %52 {strides = array<i32>} : memref<16x32xf32, #tpu.memory_space<vmem>>, vector<2x32xf32>,
    %c4 = arith.constant 4 : index
    %c0_27 = arith.constant 0 : index
    %54 = vector.load %arg10[%c4, %c0_27] : memref<16x128xf32, #tpu.memory_space<vmem>>, vector<2x128xf32>
    %cst_28 = arith.constant dense<0.000000e+00> : vector<2x128xf32>
    %55 = tpu.matmul %52, %11, %cst_28 {dimension_numbers = #tpu.dot_dimension_numbers<[1], [0], [0], [1], [0, 0, 1, 1], [], []>} : vector<2x32xf32>, vector<32x128xf32>, vector<2x128xf32> -> vector<2x128xf32>
    %56 = arith.addf %54, %55 : vector<2x128xf32>
    %57 = arith.negf %56 : vector<2x128xf32>
    %58 = math.exp %57 : vector<2x128xf32>
    %cst_29 = arith.constant 1.000000e+00 : f32
    %59 = vector.broadcast %cst_29 : f32 to vector<2x128xf32>
    %60 = arith.addf %59, %58 : vector<2x128xf32>
    %61 = arith.divf %59, %60 : vector<2x128xf32>
    %62 = math.tanh %56 : vector<2x128xf32>
    %63 = vector.extract_strided_slice %61 {offsets = [0, 0], sizes = [2, 32], strides = [1, 1]} : vector<2x128xf32> to vector<2x32xf32>
    %64 = vector.extract_strided_slice %61 {offsets = [0, 32], sizes = [2, 32], strides = [1, 1]} : vector<2x128xf32> to vector<2x32xf32>
    %65 = vector.extract_strided_slice %62 {offsets = [0, 64], sizes = [2, 32], strides = [1, 1]} : vector<2x128xf32> to vector<2x32xf32>
    %66 = vector.extract_strided_slice %61 {offsets = [0, 96], sizes = [2, 32], strides = [1, 1]} : vector<2x128xf32> to vector<2x32xf32>
    %67 = arith.mulf %64, %50 : vector<2x32xf32>
    %68 = arith.mulf %63, %65 : vector<2x32xf32>
    %69 = arith.addf %67, %68 : vector<2x32xf32>
    %70 = math.tanh %69 : vector<2x32xf32>
    %71 = arith.mulf %66, %70 : vector<2x32xf32>
    %c4_30 = arith.constant 4 : index
    %c0_31 = arith.constant 0 : index
    %72 = vector.load %arg7[%c4_30, %c0_31] : memref<16x32xf32, #tpu.memory_space<vmem>>, vector<2x32xf32>
    tpu.vector_store %arg7[%c4_30, %c0_31], %71 {strides = array<i32>} : memref<16x32xf32, #tpu.memory_space<vmem>>, vector<2x32xf32>,
    %c6 = arith.constant 6 : index
    %c0_32 = arith.constant 0 : index
    %73 = vector.load %arg10[%c6, %c0_32] : memref<16x128xf32, #tpu.memory_space<vmem>>, vector<2x128xf32>
    %cst_33 = arith.constant dense<0.000000e+00> : vector<2x128xf32>
    %74 = tpu.matmul %71, %11, %cst_33 {dimension_numbers = #tpu.dot_dimension_numbers<[1], [0], [0], [1], [0, 0, 1, 1], [], []>} : vector<2x32xf32>, vector<32x128xf32>, vector<2x128xf32> -> vector<2x128xf32>
    %75 = arith.addf %73, %74 : vector<2x128xf32>
    %76 = arith.negf %75 : vector<2x128xf32>
    %77 = math.exp %76 : vector<2x128xf32>
    %cst_34 = arith.constant 1.000000e+00 : f32
    %78 = vector.broadcast %cst_34 : f32 to vector<2x128xf32>
    %79 = arith.addf %78, %77 : vector<2x128xf32>
    %80 = arith.divf %78, %79 : vector<2x128xf32>
    %81 = math.tanh %75 : vector<2x128xf32>
    %82 = vector.extract_strided_slice %80 {offsets = [0, 0], sizes = [2, 32], strides = [1, 1]} : vector<2x128xf32> to vector<2x32xf32>
    %83 = vector.extract_strided_slice %80 {offsets = [0, 32], sizes = [2, 32], strides = [1, 1]} : vector<2x128xf32> to vector<2x32xf32>
    %84 = vector.extract_strided_slice %81 {offsets = [0, 64], sizes = [2, 32], strides = [1, 1]} : vector<2x128xf32> to vector<2x32xf32>
    %85 = vector.extract_strided_slice %80 {offsets = [0, 96], sizes = [2, 32], strides = [1, 1]} : vector<2x128xf32> to vector<2x32xf32>
    %86 = arith.mulf %83, %69 : vector<2x32xf32>
    %87 = arith.mulf %82, %84 : vector<2x32xf32>
    %88 = arith.addf %86, %87 : vector<2x32xf32>
    %89 = math.tanh %88 : vector<2x32xf32>
    %90 = arith.mulf %85, %89 : vector<2x32xf32>
    %c6_35 = arith.constant 6 : index
    %c0_36 = arith.constant 0 : index
    %91 = vector.load %arg7[%c6_35, %c0_36] : memref<16x32xf32, #tpu.memory_space<vmem>>, vector<2x32xf32>
    tpu.vector_store %arg7[%c6_35, %c0_36], %90 {strides = array<i32>} : memref<16x32xf32, #tpu.memory_space<vmem>>, vector<2x32xf32>,
    %c8 = arith.constant 8 : index
    %c0_37 = arith.constant 0 : index
    %92 = vector.load %arg10[%c8, %c0_37] : memref<16x128xf32, #tpu.memory_space<vmem>>, vector<2x128xf32>
    %cst_38 = arith.constant dense<0.000000e+00> : vector<2x128xf32>
    %93 = tpu.matmul %90, %11, %cst_38 {dimension_numbers = #tpu.dot_dimension_numbers<[1], [0], [0], [1], [0, 0, 1, 1], [], []>} : vector<2x32xf32>, vector<32x128xf32>, vector<2x128xf32> -> vector<2x128xf32>
    %94 = arith.addf %92, %93 : vector<2x128xf32>
    %95 = arith.negf %94 : vector<2x128xf32>
    %96 = math.exp %95 : vector<2x128xf32>
    %cst_39 = arith.constant 1.000000e+00 : f32
    %97 = vector.broadcast %cst_39 : f32 to vector<2x128xf32>
    %98 = arith.addf %97, %96 : vector<2x128xf32>
    %99 = arith.divf %97, %98 : vector<2x128xf32>
    %100 = math.tanh %94 : vector<2x128xf32>
    %101 = vector.extract_strided_slice %99 {offsets = [0, 0], sizes = [2, 32], strides = [1, 1]} : vector<2x128xf32> to vector<2x32xf32>
    %102 = vector.extract_strided_slice %99 {offsets = [0, 32], sizes = [2, 32], strides = [1, 1]} : vector<2x128xf32> to vector<2x32xf32>
    %103 = vector.extract_strided_slice %100 {offsets = [0, 64], sizes = [2, 32], strides = [1, 1]} : vector<2x128xf32> to vector<2x32xf32>
    %104 = vector.extract_strided_slice %99 {offsets = [0, 96], sizes = [2, 32], strides = [1, 1]} : vector<2x128xf32> to vector<2x32xf32>
    %105 = arith.mulf %102, %88 : vector<2x32xf32>
    %106 = arith.mulf %101, %103 : vector<2x32xf32>
    %107 = arith.addf %105, %106 : vector<2x32xf32>
    %108 = math.tanh %107 : vector<2x32xf32>
    %109 = arith.mulf %104, %108 : vector<2x32xf32>
    %c8_40 = arith.constant 8 : index
    %c0_41 = arith.constant 0 : index
    %110 = vector.load %arg7[%c8_40, %c0_41] : memref<16x32xf32, #tpu.memory_space<vmem>>, vector<2x32xf32>
    tpu.vector_store %arg7[%c8_40, %c0_41], %109 {strides = array<i32>} : memref<16x32xf32, #tpu.memory_space<vmem>>, vector<2x32xf32>,
    %c10 = arith.constant 10 : index
    %c0_42 = arith.constant 0 : index
    %111 = vector.load %arg10[%c10, %c0_42] : memref<16x128xf32, #tpu.memory_space<vmem>>, vector<2x128xf32>
    %cst_43 = arith.constant dense<0.000000e+00> : vector<2x128xf32>
    %112 = tpu.matmul %109, %11, %cst_43 {dimension_numbers = #tpu.dot_dimension_numbers<[1], [0], [0], [1], [0, 0, 1, 1], [], []>} : vector<2x32xf32>, vector<32x128xf32>, vector<2x128xf32> -> vector<2x128xf32>
    %113 = arith.addf %111, %112 : vector<2x128xf32>
    %114 = arith.negf %113 : vector<2x128xf32>
    %115 = math.exp %114 : vector<2x128xf32>
    %cst_44 = arith.constant 1.000000e+00 : f32
    %116 = vector.broadcast %cst_44 : f32 to vector<2x128xf32>
    %117 = arith.addf %116, %115 : vector<2x128xf32>
    %118 = arith.divf %116, %117 : vector<2x128xf32>
    %119 = math.tanh %113 : vector<2x128xf32>
    %120 = vector.extract_strided_slice %118 {offsets = [0, 0], sizes = [2, 32], strides = [1, 1]} : vector<2x128xf32> to vector<2x32xf32>
    %121 = vector.extract_strided_slice %118 {offsets = [0, 32], sizes = [2, 32], strides = [1, 1]} : vector<2x128xf32> to vector<2x32xf32>
    %122 = vector.extract_strided_slice %119 {offsets = [0, 64], sizes = [2, 32], strides = [1, 1]} : vector<2x128xf32> to vector<2x32xf32>
    %123 = vector.extract_strided_slice %118 {offsets = [0, 96], sizes = [2, 32], strides = [1, 1]} : vector<2x128xf32> to vector<2x32xf32>
    %124 = arith.mulf %121, %107 : vector<2x32xf32>
    %125 = arith.mulf %120, %122 : vector<2x32xf32>
    %126 = arith.addf %124, %125 : vector<2x32xf32>
    %127 = math.tanh %126 : vector<2x32xf32>
    %128 = arith.mulf %123, %127 : vector<2x32xf32>
    %c10_45 = arith.constant 10 : index
    %c0_46 = arith.constant 0 : index
    %129 = vector.load %arg7[%c10_45, %c0_46] : memref<16x32xf32, #tpu.memory_space<vmem>>, vector<2x32xf32>
    tpu.vector_store %arg7[%c10_45, %c0_46], %128 {strides = array<i32>} : memref<16x32xf32, #tpu.memory_space<vmem>>, vector<2x32xf32>,
    %c12 = arith.constant 12 : index
    %c0_47 = arith.constant 0 : index
    %130 = vector.load %arg10[%c12, %c0_47] : memref<16x128xf32, #tpu.memory_space<vmem>>, vector<2x128xf32>
    %cst_48 = arith.constant dense<0.000000e+00> : vector<2x128xf32>
    %131 = tpu.matmul %128, %11, %cst_48 {dimension_numbers = #tpu.dot_dimension_numbers<[1], [0], [0], [1], [0, 0, 1, 1], [], []>} : vector<2x32xf32>, vector<32x128xf32>, vector<2x128xf32> -> vector<2x128xf32>
    %132 = arith.addf %130, %131 : vector<2x128xf32>
    %133 = arith.negf %132 : vector<2x128xf32>
    %134 = math.exp %133 : vector<2x128xf32>
    %cst_49 = arith.constant 1.000000e+00 : f32
    %135 = vector.broadcast %cst_49 : f32 to vector<2x128xf32>
    %136 = arith.addf %135, %134 : vector<2x128xf32>
    %137 = arith.divf %135, %136 : vector<2x128xf32>
    %138 = math.tanh %132 : vector<2x128xf32>
    %139 = vector.extract_strided_slice %137 {offsets = [0, 0], sizes = [2, 32], strides = [1, 1]} : vector<2x128xf32> to vector<2x32xf32>
    %140 = vector.extract_strided_slice %137 {offsets = [0, 32], sizes = [2, 32], strides = [1, 1]} : vector<2x128xf32> to vector<2x32xf32>
    %141 = vector.extract_strided_slice %138 {offsets = [0, 64], sizes = [2, 32], strides = [1, 1]} : vector<2x128xf32> to vector<2x32xf32>
    %142 = vector.extract_strided_slice %137 {offsets = [0, 96], sizes = [2, 32], strides = [1, 1]} : vector<2x128xf32> to vector<2x32xf32>
    %143 = arith.mulf %140, %126 : vector<2x32xf32>
    %144 = arith.mulf %139, %141 : vector<2x32xf32>
    %145 = arith.addf %143, %144 : vector<2x32xf32>
    %146 = math.tanh %145 : vector<2x32xf32>
    %147 = arith.mulf %142, %146 : vector<2x32xf32>
    %c12_50 = arith.constant 12 : index
    %c0_51 = arith.constant 0 : index
    %148 = vector.load %arg7[%c12_50, %c0_51] : memref<16x32xf32, #tpu.memory_space<vmem>>, vector<2x32xf32>
    tpu.vector_store %arg7[%c12_50, %c0_51], %147 {strides = array<i32>} : memref<16x32xf32, #tpu.memory_space<vmem>>, vector<2x32xf32>,
    %c14 = arith.constant 14 : index
    %c0_52 = arith.constant 0 : index
    %149 = vector.load %arg10[%c14, %c0_52] : memref<16x128xf32, #tpu.memory_space<vmem>>, vector<2x128xf32>
    %cst_53 = arith.constant dense<0.000000e+00> : vector<2x128xf32>
    %150 = tpu.matmul %147, %11, %cst_53 {dimension_numbers = #tpu.dot_dimension_numbers<[1], [0], [0], [1], [0, 0, 1, 1], [], []>} : vector<2x32xf32>, vector<32x128xf32>, vector<2x128xf32> -> vector<2x128xf32>
    %151 = arith.addf %149, %150 : vector<2x128xf32>
    %152 = arith.negf %151 : vector<2x128xf32>
    %153 = math.exp %152 : vector<2x128xf32>
    %cst_54 = arith.constant 1.000000e+00 : f32
    %154 = vector.broadcast %cst_54 : f32 to vector<2x128xf32>
    %155 = arith.addf %154, %153 : vector<2x128xf32>
    %156 = arith.divf %154, %155 : vector<2x128xf32>
    %157 = math.tanh %151 : vector<2x128xf32>
    %158 = vector.extract_strided_slice %156 {offsets = [0, 0], sizes = [2, 32], strides = [1, 1]} : vector<2x128xf32> to vector<2x32xf32>
    %159 = vector.extract_strided_slice %156 {offsets = [0, 32], sizes = [2, 32], strides = [1, 1]} : vector<2x128xf32> to vector<2x32xf32>
    %160 = vector.extract_strided_slice %157 {offsets = [0, 64], sizes = [2, 32], strides = [1, 1]} : vector<2x128xf32> to vector<2x32xf32>
    %161 = vector.extract_strided_slice %156 {offsets = [0, 96], sizes = [2, 32], strides = [1, 1]} : vector<2x128xf32> to vector<2x32xf32>
    %162 = arith.mulf %159, %145 : vector<2x32xf32>
    %163 = arith.mulf %158, %160 : vector<2x32xf32>
    %164 = arith.addf %162, %163 : vector<2x32xf32>
    %165 = math.tanh %164 : vector<2x32xf32>
    %166 = arith.mulf %161, %165 : vector<2x32xf32>
    %c14_55 = arith.constant 14 : index
    %c0_56 = arith.constant 0 : index
    %167 = vector.load %arg7[%c14_55, %c0_56] : memref<16x32xf32, #tpu.memory_space<vmem>>, vector<2x32xf32>
    tpu.vector_store %arg7[%c14_55, %c0_56], %166 {strides = array<i32>} : memref<16x32xf32, #tpu.memory_space<vmem>>, vector<2x32xf32>,
    %c0_57 = arith.constant 0 : index
    %c0_58 = arith.constant 0 : index
    %c0_59 = arith.constant 0 : index
    %168 = vector.load %arg8[%c0_57, %c0_58, %c0_59] : memref<2x2x32xf32, #tpu.memory_space<vmem>>, vector<1x2x32xf32>
    %169 = vector.shape_cast %168 : vector<1x2x32xf32> to vector<2x32xf32>
    %170 = vector.shape_cast %166 : vector<2x32xf32> to vector<1x2x32xf32>
    tpu.vector_store %arg8[%c0_57, %c0_58, %c0_59], %170 {strides = array<i32>} : memref<2x2x32xf32, #tpu.memory_space<vmem>>, vector<1x2x32xf32>,
    %c0_60 = arith.constant 0 : index
    %c0_61 = arith.constant 0 : index
    %c0_62 = arith.constant 0 : index
    %171 = vector.load %arg9[%c0_60, %c0_61, %c0_62] : memref<2x2x32xf32, #tpu.memory_space<vmem>>, vector<1x2x32xf32>
    %172 = vector.shape_cast %171 : vector<1x2x32xf32> to vector<2x32xf32>
    %173 = vector.shape_cast %164 : vector<2x32xf32> to vector<1x2x32xf32>
    tpu.vector_store %arg9[%c0_60, %c0_61, %c0_62], %173 {strides = array<i32>} : memref<2x2x32xf32, #tpu.memory_space<vmem>>, vector<1x2x32xf32>,
    %c1 = arith.constant 1 : index
    %c0_63 = arith.constant 0 : index
    %c0_64 = arith.constant 0 : index
    %174 = vector.load %arg4[%c1, %c0_63, %c0_64] : memref<2x1x128xf32, #tpu.memory_space<vmem>>, vector<1x1x128xf32>
    %175 = vector.shape_cast %174 : vector<1x1x128xf32> to vector<1x128xf32>
    %c0_65 = arith.constant 0 : index
    %c0_66 = arith.constant 0 : index
    %176 = vector.load %arg7[%c0_65, %c0_66] : memref<16x32xf32, #tpu.memory_space<vmem>>, vector<16x32xf32>
    %c0_67 = arith.constant 0 : index
    %c0_68 = arith.constant 0 : index
    %c0_69 = arith.constant 0 : index
    %177 = vector.load %arg2[%c0_67, %c0_68, %c0_69] : memref<1x32x128xf32, #tpu.memory_space<vmem>>, vector<1x32x128xf32>
    %178 = vector.shape_cast %177 : vector<1x32x128xf32> to vector<32x128xf32>
    %cst_70 = arith.constant dense<0.000000e+00> : vector<16x128xf32>
    %179 = tpu.matmul %176, %178, %cst_70 {dimension_numbers = #tpu.dot_dimension_numbers<[1], [0], [0], [1], [0, 0, 1, 1], [], []>} : vector<16x32xf32>, vector<32x128xf32>, vector<16x128xf32> -> vector<16x128xf32>
    %180 = vector.broadcast %175 : vector<1x128xf32> to vector<16x128xf32>
    %181 = arith.addf %179, %180 : vector<16x128xf32>
    %c0_71 = arith.constant 0 : index
    %c0_72 = arith.constant 0 : index
    %182 = vector.load %arg10[%c0_71, %c0_72] : memref<16x128xf32, #tpu.memory_space<vmem>>, vector<16x128xf32>
    tpu.vector_store %arg10[%c0_71, %c0_72], %181 {strides = array<i32>} : memref<16x128xf32, #tpu.memory_space<vmem>>, vector<16x128xf32>,
    %c1_73 = arith.constant 1 : index
    %c0_74 = arith.constant 0 : index
    %c0_75 = arith.constant 0 : index
    %183 = vector.load %arg3[%c1_73, %c0_74, %c0_75] : memref<2x32x128xf32, #tpu.memory_space<vmem>>, vector<1x32x128xf32>
    %184 = vector.shape_cast %183 : vector<1x32x128xf32> to vector<32x128xf32>
    %c1_76 = arith.constant 1 : index
    %c0_77 = arith.constant 0 : index
    %c0_78 = arith.constant 0 : index
    %185 = vector.load %arg5[%c1_76, %c0_77, %c0_78] : memref<2x2x32xf32, #tpu.memory_space<vmem>>, vector<1x2x32xf32>
    %186 = vector.shape_cast %185 : vector<1x2x32xf32> to vector<2x32xf32>
    %c1_79 = arith.constant 1 : index
    %c0_80 = arith.constant 0 : index
    %c0_81 = arith.constant 0 : index
    %187 = vector.load %arg6[%c1_79, %c0_80, %c0_81] : memref<2x2x32xf32, #tpu.memory_space<vmem>>, vector<1x2x32xf32>
    %188 = vector.shape_cast %187 : vector<1x2x32xf32> to vector<2x32xf32>
    %c0_82 = arith.constant 0 : index
    %c0_83 = arith.constant 0 : index
    %189 = vector.load %arg10[%c0_82, %c0_83] : memref<16x128xf32, #tpu.memory_space<vmem>>, vector<2x128xf32>
    %cst_84 = arith.constant dense<0.000000e+00> : vector<2x128xf32>
    %190 = tpu.matmul %186, %184, %cst_84 {dimension_numbers = #tpu.dot_dimension_numbers<[1], [0], [0], [1], [0, 0, 1, 1], [], []>} : vector<2x32xf32>, vector<32x128xf32>, vector<2x128xf32> -> vector<2x128xf32>
    %191 = arith.addf %189, %190 : vector<2x128xf32>
    %192 = arith.negf %191 : vector<2x128xf32>
    %193 = math.exp %192 : vector<2x128xf32>
    %cst_85 = arith.constant 1.000000e+00 : f32
    %194 = vector.broadcast %cst_85 : f32 to vector<2x128xf32>
    %195 = arith.addf %194, %193 : vector<2x128xf32>
    %196 = arith.divf %194, %195 : vector<2x128xf32>
    %197 = math.tanh %191 : vector<2x128xf32>
    %198 = vector.extract_strided_slice %196 {offsets = [0, 0], sizes = [2, 32], strides = [1, 1]} : vector<2x128xf32> to vector<2x32xf32>
    %199 = vector.extract_strided_slice %196 {offsets = [0, 32], sizes = [2, 32], strides = [1, 1]} : vector<2x128xf32> to vector<2x32xf32>
    %200 = vector.extract_strided_slice %197 {offsets = [0, 64], sizes = [2, 32], strides = [1, 1]} : vector<2x128xf32> to vector<2x32xf32>
    %201 = vector.extract_strided_slice %196 {offsets = [0, 96], sizes = [2, 32], strides = [1, 1]} : vector<2x128xf32> to vector<2x32xf32>
    %202 = arith.mulf %199, %188 : vector<2x32xf32>
    %203 = arith.mulf %198, %200 : vector<2x32xf32>
    %204 = arith.addf %202, %203 : vector<2x32xf32>
    %205 = math.tanh %204 : vector<2x32xf32>
    %206 = arith.mulf %201, %205 : vector<2x32xf32>
    %c0_86 = arith.constant 0 : index
    %c0_87 = arith.constant 0 : index
    %207 = vector.load %arg7[%c0_86, %c0_87] : memref<16x32xf32, #tpu.memory_space<vmem>>, vector<2x32xf32>
    tpu.vector_store %arg7[%c0_86, %c0_87], %206 {strides = array<i32>} : memref<16x32xf32, #tpu.memory_space<vmem>>, vector<2x32xf32>,
    %c2_88 = arith.constant 2 : index
    %c0_89 = arith.constant 0 : index
    %208 = vector.load %arg10[%c2_88, %c0_89] : memref<16x128xf32, #tpu.memory_space<vmem>>, vector<2x128xf32>
    %cst_90 = arith.constant dense<0.000000e+00> : vector<2x128xf32>
    %209 = tpu.matmul %206, %184, %cst_90 {dimension_numbers = #tpu.dot_dimension_numbers<[1], [0], [0], [1], [0, 0, 1, 1], [], []>} : vector<2x32xf32>, vector<32x128xf32>, vector<2x128xf32> -> vector<2x128xf32>
    %210 = arith.addf %208, %209 : vector<2x128xf32>
    %211 = arith.negf %210 : vector<2x128xf32>
    %212 = math.exp %211 : vector<2x128xf32>
    %cst_91 = arith.constant 1.000000e+00 : f32
    %213 = vector.broadcast %cst_91 : f32 to vector<2x128xf32>
    %214 = arith.addf %213, %212 : vector<2x128xf32>
    %215 = arith.divf %213, %214 : vector<2x128xf32>
    %216 = math.tanh %210 : vector<2x128xf32>
    %217 = vector.extract_strided_slice %215 {offsets = [0, 0], sizes = [2, 32], strides = [1, 1]} : vector<2x128xf32> to vector<2x32xf32>
    %218 = vector.extract_strided_slice %215 {offsets = [0, 32], sizes = [2, 32], strides = [1, 1]} : vector<2x128xf32> to vector<2x32xf32>
    %219 = vector.extract_strided_slice %216 {offsets = [0, 64], sizes = [2, 32], strides = [1, 1]} : vector<2x128xf32> to vector<2x32xf32>
    %220 = vector.extract_strided_slice %215 {offsets = [0, 96], sizes = [2, 32], strides = [1, 1]} : vector<2x128xf32> to vector<2x32xf32>
    %221 = arith.mulf %218, %204 : vector<2x32xf32>
    %222 = arith.mulf %217, %219 : vector<2x32xf32>
    %223 = arith.addf %221, %222 : vector<2x32xf32>
    %224 = math.tanh %223 : vector<2x32xf32>
    %225 = arith.mulf %220, %224 : vector<2x32xf32>
    %c2_92 = arith.constant 2 : index
    %c0_93 = arith.constant 0 : index
    %226 = vector.load %arg7[%c2_92, %c0_93] : memref<16x32xf32, #tpu.memory_space<vmem>>, vector<2x32xf32>
    tpu.vector_store %arg7[%c2_92, %c0_93], %225 {strides = array<i32>} : memref<16x32xf32, #tpu.memory_space<vmem>>, vector<2x32xf32>,
    %c4_94 = arith.constant 4 : index
    %c0_95 = arith.constant 0 : index
    %227 = vector.load %arg10[%c4_94, %c0_95] : memref<16x128xf32, #tpu.memory_space<vmem>>, vector<2x128xf32>
    %cst_96 = arith.constant dense<0.000000e+00> : vector<2x128xf32>
    %228 = tpu.matmul %225, %184, %cst_96 {dimension_numbers = #tpu.dot_dimension_numbers<[1], [0], [0], [1], [0, 0, 1, 1], [], []>} : vector<2x32xf32>, vector<32x128xf32>, vector<2x128xf32> -> vector<2x128xf32>
    %229 = arith.addf %227, %228 : vector<2x128xf32>
    %230 = arith.negf %229 : vector<2x128xf32>
    %231 = math.exp %230 : vector<2x128xf32>
    %cst_97 = arith.constant 1.000000e+00 : f32
    %232 = vector.broadcast %cst_97 : f32 to vector<2x128xf32>
    %233 = arith.addf %232, %231 : vector<2x128xf32>
    %234 = arith.divf %232, %233 : vector<2x128xf32>
    %235 = math.tanh %229 : vector<2x128xf32>
    %236 = vector.extract_strided_slice %234 {offsets = [0, 0], sizes = [2, 32], strides = [1, 1]} : vector<2x128xf32> to vector<2x32xf32>
    %237 = vector.extract_strided_slice %234 {offsets = [0, 32], sizes = [2, 32], strides = [1, 1]} : vector<2x128xf32> to vector<2x32xf32>
    %238 = vector.extract_strided_slice %235 {offsets = [0, 64], sizes = [2, 32], strides = [1, 1]} : vector<2x128xf32> to vector<2x32xf32>
    %239 = vector.extract_strided_slice %234 {offsets = [0, 96], sizes = [2, 32], strides = [1, 1]} : vector<2x128xf32> to vector<2x32xf32>
    %240 = arith.mulf %237, %223 : vector<2x32xf32>
    %241 = arith.mulf %236, %238 : vector<2x32xf32>
    %242 = arith.addf %240, %241 : vector<2x32xf32>
    %243 = math.tanh %242 : vector<2x32xf32>
    %244 = arith.mulf %239, %243 : vector<2x32xf32>
    %c4_98 = arith.constant 4 : index
    %c0_99 = arith.constant 0 : index
    %245 = vector.load %arg7[%c4_98, %c0_99] : memref<16x32xf32, #tpu.memory_space<vmem>>, vector<2x32xf32>
    tpu.vector_store %arg7[%c4_98, %c0_99], %244 {strides = array<i32>} : memref<16x32xf32, #tpu.memory_space<vmem>>, vector<2x32xf32>,
    %c6_100 = arith.constant 6 : index
    %c0_101 = arith.constant 0 : index
    %246 = vector.load %arg10[%c6_100, %c0_101] : memref<16x128xf32, #tpu.memory_space<vmem>>, vector<2x128xf32>
    %cst_102 = arith.constant dense<0.000000e+00> : vector<2x128xf32>
    %247 = tpu.matmul %244, %184, %cst_102 {dimension_numbers = #tpu.dot_dimension_numbers<[1], [0], [0], [1], [0, 0, 1, 1], [], []>} : vector<2x32xf32>, vector<32x128xf32>, vector<2x128xf32> -> vector<2x128xf32>
    %248 = arith.addf %246, %247 : vector<2x128xf32>
    %249 = arith.negf %248 : vector<2x128xf32>
    %250 = math.exp %249 : vector<2x128xf32>
    %cst_103 = arith.constant 1.000000e+00 : f32
    %251 = vector.broadcast %cst_103 : f32 to vector<2x128xf32>
    %252 = arith.addf %251, %250 : vector<2x128xf32>
    %253 = arith.divf %251, %252 : vector<2x128xf32>
    %254 = math.tanh %248 : vector<2x128xf32>
    %255 = vector.extract_strided_slice %253 {offsets = [0, 0], sizes = [2, 32], strides = [1, 1]} : vector<2x128xf32> to vector<2x32xf32>
    %256 = vector.extract_strided_slice %253 {offsets = [0, 32], sizes = [2, 32], strides = [1, 1]} : vector<2x128xf32> to vector<2x32xf32>
    %257 = vector.extract_strided_slice %254 {offsets = [0, 64], sizes = [2, 32], strides = [1, 1]} : vector<2x128xf32> to vector<2x32xf32>
    %258 = vector.extract_strided_slice %253 {offsets = [0, 96], sizes = [2, 32], strides = [1, 1]} : vector<2x128xf32> to vector<2x32xf32>
    %259 = arith.mulf %256, %242 : vector<2x32xf32>
    %260 = arith.mulf %255, %257 : vector<2x32xf32>
    %261 = arith.addf %259, %260 : vector<2x32xf32>
    %262 = math.tanh %261 : vector<2x32xf32>
    %263 = arith.mulf %258, %262 : vector<2x32xf32>
    %c6_104 = arith.constant 6 : index
    %c0_105 = arith.constant 0 : index
    %264 = vector.load %arg7[%c6_104, %c0_105] : memref<16x32xf32, #tpu.memory_space<vmem>>, vector<2x32xf32>
    tpu.vector_store %arg7[%c6_104, %c0_105], %263 {strides = array<i32>} : memref<16x32xf32, #tpu.memory_space<vmem>>, vector<2x32xf32>,
    %c8_106 = arith.constant 8 : index
    %c0_107 = arith.constant 0 : index
    %265 = vector.load %arg10[%c8_106, %c0_107] : memref<16x128xf32, #tpu.memory_space<vmem>>, vector<2x128xf32>
    %cst_108 = arith.constant dense<0.000000e+00> : vector<2x128xf32>
    %266 = tpu.matmul %263, %184, %cst_108 {dimension_numbers = #tpu.dot_dimension_numbers<[1], [0], [0], [1], [0, 0, 1, 1], [], []>} : vector<2x32xf32>, vector<32x128xf32>, vector<2x128xf32> -> vector<2x128xf32>
    %267 = arith.addf %265, %266 : vector<2x128xf32>
    %268 = arith.negf %267 : vector<2x128xf32>
    %269 = math.exp %268 : vector<2x128xf32>
    %cst_109 = arith.constant 1.000000e+00 : f32
    %270 = vector.broadcast %cst_109 : f32 to vector<2x128xf32>
    %271 = arith.addf %270, %269 : vector<2x128xf32>
    %272 = arith.divf %270, %271 : vector<2x128xf32>
    %273 = math.tanh %267 : vector<2x128xf32>
    %274 = vector.extract_strided_slice %272 {offsets = [0, 0], sizes = [2, 32], strides = [1, 1]} : vector<2x128xf32> to vector<2x32xf32>
    %275 = vector.extract_strided_slice %272 {offsets = [0, 32], sizes = [2, 32], strides = [1, 1]} : vector<2x128xf32> to vector<2x32xf32>
    %276 = vector.extract_strided_slice %273 {offsets = [0, 64], sizes = [2, 32], strides = [1, 1]} : vector<2x128xf32> to vector<2x32xf32>
    %277 = vector.extract_strided_slice %272 {offsets = [0, 96], sizes = [2, 32], strides = [1, 1]} : vector<2x128xf32> to vector<2x32xf32>
    %278 = arith.mulf %275, %261 : vector<2x32xf32>
    %279 = arith.mulf %274, %276 : vector<2x32xf32>
    %280 = arith.addf %278, %279 : vector<2x32xf32>
    %281 = math.tanh %280 : vector<2x32xf32>
    %282 = arith.mulf %277, %281 : vector<2x32xf32>
    %c8_110 = arith.constant 8 : index
    %c0_111 = arith.constant 0 : index
    %283 = vector.load %arg7[%c8_110, %c0_111] : memref<16x32xf32, #tpu.memory_space<vmem>>, vector<2x32xf32>
    tpu.vector_store %arg7[%c8_110, %c0_111], %282 {strides = array<i32>} : memref<16x32xf32, #tpu.memory_space<vmem>>, vector<2x32xf32>,
    %c10_112 = arith.constant 10 : index
    %c0_113 = arith.constant 0 : index
    %284 = vector.load %arg10[%c10_112, %c0_113] : memref<16x128xf32, #tpu.memory_space<vmem>>, vector<2x128xf32>
    %cst_114 = arith.constant dense<0.000000e+00> : vector<2x128xf32>
    %285 = tpu.matmul %282, %184, %cst_114 {dimension_numbers = #tpu.dot_dimension_numbers<[1], [0], [0], [1], [0, 0, 1, 1], [], []>} : vector<2x32xf32>, vector<32x128xf32>, vector<2x128xf32> -> vector<2x128xf32>
    %286 = arith.addf %284, %285 : vector<2x128xf32>
    %287 = arith.negf %286 : vector<2x128xf32>
    %288 = math.exp %287 : vector<2x128xf32>
    %cst_115 = arith.constant 1.000000e+00 : f32
    %289 = vector.broadcast %cst_115 : f32 to vector<2x128xf32>
    %290 = arith.addf %289, %288 : vector<2x128xf32>
    %291 = arith.divf %289, %290 : vector<2x128xf32>
    %292 = math.tanh %286 : vector<2x128xf32>
    %293 = vector.extract_strided_slice %291 {offsets = [0, 0], sizes = [2, 32], strides = [1, 1]} : vector<2x128xf32> to vector<2x32xf32>
    %294 = vector.extract_strided_slice %291 {offsets = [0, 32], sizes = [2, 32], strides = [1, 1]} : vector<2x128xf32> to vector<2x32xf32>
    %295 = vector.extract_strided_slice %292 {offsets = [0, 64], sizes = [2, 32], strides = [1, 1]} : vector<2x128xf32> to vector<2x32xf32>
    %296 = vector.extract_strided_slice %291 {offsets = [0, 96], sizes = [2, 32], strides = [1, 1]} : vector<2x128xf32> to vector<2x32xf32>
    %297 = arith.mulf %294, %280 : vector<2x32xf32>
    %298 = arith.mulf %293, %295 : vector<2x32xf32>
    %299 = arith.addf %297, %298 : vector<2x32xf32>
    %300 = math.tanh %299 : vector<2x32xf32>
    %301 = arith.mulf %296, %300 : vector<2x32xf32>
    %c10_116 = arith.constant 10 : index
    %c0_117 = arith.constant 0 : index
    %302 = vector.load %arg7[%c10_116, %c0_117] : memref<16x32xf32, #tpu.memory_space<vmem>>, vector<2x32xf32>
    tpu.vector_store %arg7[%c10_116, %c0_117], %301 {strides = array<i32>} : memref<16x32xf32, #tpu.memory_space<vmem>>, vector<2x32xf32>,
    %c12_118 = arith.constant 12 : index
    %c0_119 = arith.constant 0 : index
    %303 = vector.load %arg10[%c12_118, %c0_119] : memref<16x128xf32, #tpu.memory_space<vmem>>, vector<2x128xf32>
    %cst_120 = arith.constant dense<0.000000e+00> : vector<2x128xf32>
    %304 = tpu.matmul %301, %184, %cst_120 {dimension_numbers = #tpu.dot_dimension_numbers<[1], [0], [0], [1], [0, 0, 1, 1], [], []>} : vector<2x32xf32>, vector<32x128xf32>, vector<2x128xf32> -> vector<2x128xf32>
    %305 = arith.addf %303, %304 : vector<2x128xf32>
    %306 = arith.negf %305 : vector<2x128xf32>
    %307 = math.exp %306 : vector<2x128xf32>
    %cst_121 = arith.constant 1.000000e+00 : f32
    %308 = vector.broadcast %cst_121 : f32 to vector<2x128xf32>
    %309 = arith.addf %308, %307 : vector<2x128xf32>
    %310 = arith.divf %308, %309 : vector<2x128xf32>
    %311 = math.tanh %305 : vector<2x128xf32>
    %312 = vector.extract_strided_slice %310 {offsets = [0, 0], sizes = [2, 32], strides = [1, 1]} : vector<2x128xf32> to vector<2x32xf32>
    %313 = vector.extract_strided_slice %310 {offsets = [0, 32], sizes = [2, 32], strides = [1, 1]} : vector<2x128xf32> to vector<2x32xf32>
    %314 = vector.extract_strided_slice %311 {offsets = [0, 64], sizes = [2, 32], strides = [1, 1]} : vector<2x128xf32> to vector<2x32xf32>
    %315 = vector.extract_strided_slice %310 {offsets = [0, 96], sizes = [2, 32], strides = [1, 1]} : vector<2x128xf32> to vector<2x32xf32>
    %316 = arith.mulf %313, %299 : vector<2x32xf32>
    %317 = arith.mulf %312, %314 : vector<2x32xf32>
    %318 = arith.addf %316, %317 : vector<2x32xf32>
    %319 = math.tanh %318 : vector<2x32xf32>
    %320 = arith.mulf %315, %319 : vector<2x32xf32>
    %c12_122 = arith.constant 12 : index
    %c0_123 = arith.constant 0 : index
    %321 = vector.load %arg7[%c12_122, %c0_123] : memref<16x32xf32, #tpu.memory_space<vmem>>, vector<2x32xf32>
    tpu.vector_store %arg7[%c12_122, %c0_123], %320 {strides = array<i32>} : memref<16x32xf32, #tpu.memory_space<vmem>>, vector<2x32xf32>,
    %c14_124 = arith.constant 14 : index
    %c0_125 = arith.constant 0 : index
    %322 = vector.load %arg10[%c14_124, %c0_125] : memref<16x128xf32, #tpu.memory_space<vmem>>, vector<2x128xf32>
    %cst_126 = arith.constant dense<0.000000e+00> : vector<2x128xf32>
    %323 = tpu.matmul %320, %184, %cst_126 {dimension_numbers = #tpu.dot_dimension_numbers<[1], [0], [0], [1], [0, 0, 1, 1], [], []>} : vector<2x32xf32>, vector<32x128xf32>, vector<2x128xf32> -> vector<2x128xf32>
    %324 = arith.addf %322, %323 : vector<2x128xf32>
    %325 = arith.negf %324 : vector<2x128xf32>
    %326 = math.exp %325 : vector<2x128xf32>
    %cst_127 = arith.constant 1.000000e+00 : f32
    %327 = vector.broadcast %cst_127 : f32 to vector<2x128xf32>
    %328 = arith.addf %327, %326 : vector<2x128xf32>
    %329 = arith.divf %327, %328 : vector<2x128xf32>
    %330 = math.tanh %324 : vector<2x128xf32>
    %331 = vector.extract_strided_slice %329 {offsets = [0, 0], sizes = [2, 32], strides = [1, 1]} : vector<2x128xf32> to vector<2x32xf32>
    %332 = vector.extract_strided_slice %329 {offsets = [0, 32], sizes = [2, 32], strides = [1, 1]} : vector<2x128xf32> to vector<2x32xf32>
    %333 = vector.extract_strided_slice %330 {offsets = [0, 64], sizes = [2, 32], strides = [1, 1]} : vector<2x128xf32> to vector<2x32xf32>
    %334 = vector.extract_strided_slice %329 {offsets = [0, 96], sizes = [2, 32], strides = [1, 1]} : vector<2x128xf32> to vector<2x32xf32>
    %335 = arith.mulf %332, %318 : vector<2x32xf32>
    %336 = arith.mulf %331, %333 : vector<2x32xf32>
    %337 = arith.addf %335, %336 : vector<2x32xf32>
    %338 = math.tanh %337 : vector<2x32xf32>
    %339 = arith.mulf %334, %338 : vector<2x32xf32>
    %c14_128 = arith.constant 14 : index
    %c0_129 = arith.constant 0 : index
    %340 = vector.load %arg7[%c14_128, %c0_129] : memref<16x32xf32, #tpu.memory_space<vmem>>, vector<2x32xf32>
    tpu.vector_store %arg7[%c14_128, %c0_129], %339 {strides = array<i32>} : memref<16x32xf32, #tpu.memory_space<vmem>>, vector<2x32xf32>,
    %c1_130 = arith.constant 1 : index
    %c0_131 = arith.constant 0 : index
    %c0_132 = arith.constant 0 : index
    %341 = vector.load %arg8[%c1_130, %c0_131, %c0_132] : memref<2x2x32xf32, #tpu.memory_space<vmem>>, vector<1x2x32xf32>
    %342 = vector.shape_cast %341 : vector<1x2x32xf32> to vector<2x32xf32>
    %343 = vector.shape_cast %339 : vector<2x32xf32> to vector<1x2x32xf32>
    tpu.vector_store %arg8[%c1_130, %c0_131, %c0_132], %343 {strides = array<i32>} : memref<2x2x32xf32, #tpu.memory_space<vmem>>, vector<1x2x32xf32>,
    %c1_133 = arith.constant 1 : index
    %c0_134 = arith.constant 0 : index
    %c0_135 = arith.constant 0 : index
    %344 = vector.load %arg9[%c1_133, %c0_134, %c0_135] : memref<2x2x32xf32, #tpu.memory_space<vmem>>, vector<1x2x32xf32>
    %345 = vector.shape_cast %344 : vector<1x2x32xf32> to vector<2x32xf32>
    %346 = vector.shape_cast %337 : vector<2x32xf32> to vector<1x2x32xf32>
    tpu.vector_store %arg9[%c1_133, %c0_134, %c0_135], %346 {strides = array<i32>} : memref<2x2x32xf32, #tpu.memory_space<vmem>>, vector<1x2x32xf32>,
    return
  }
}

</mosaic_0001>

<llo_original>
// kernel: tpu_custom_call.1
$region0: #{tpu_custom_call.1}
  #allocation0 [shape = 'u32[]', space=smem, size = 0x4, offset = 0x4, fixed_abs, tag = 'smem constant byte address 0x4 - core index']
  #allocation1 [shape = 'u32[72,128]{1,0:T(1,128)}', space=vmem, size = 0x9000, scoped, tag = 'internal scratch']
  #allocation2 [shape = 'f32[16,128]{1,0:T(8,128)}', space=vmem, size = 0x2000, scoped, tag = 'scratch operand']
  %s0 = inlined_call_operand.vmem [shape: f32[16,1], index: 0, kind: input, shape index: {}]
  %s1 = inlined_call_operand.vmem [shape: f32[1,128], index: 1, kind: input, shape index: {}]
  %s2 = inlined_call_operand.hbm [shape: f32[1,32,128], index: 2, kind: input, shape index: {}]
  %s3 = inlined_call_operand.hbm [shape: f32[2,32,128], index: 3, kind: input, shape index: {}]
  %s4 = inlined_call_operand.vmem [shape: f32[2,1,128], index: 4, kind: input, shape index: {}]
  %s5 = inlined_call_operand.hbm [shape: f32[2,2,32], index: 5, kind: input, shape index: {}, may-alias: {5,8}]
  %s6 = inlined_call_operand.hbm [shape: f32[2,2,32], index: 6, kind: input, shape index: {}, may-alias: {6,9}]
  %s7 = inlined_call_operand.hbm [shape: f32[16,32], index: 7, kind: output, shape index: {0}]
  %s8 = inlined_call_operand.hbm [shape: f32[2,2,32], index: 8, kind: output, shape index: {1}, may-alias: {5,8}]
  %s9 = inlined_call_operand.hbm [shape: f32[2,2,32], index: 9, kind: output, shape index: {2}, may-alias: {6,9}]
  %10 = xla_tuple %s7, %s8, %s9
  %s11 = sld [smem:[#allocation0]]
  $region70: #{tpu_custom_call.1} parent=0
    _
  %s13 = ssub.s32 1, %s11
  %s14 = scalar_select 0, %s13, %s11
  $region1: #{tpu_custom_call.1} parent=0
    #allocation3 [shape = 'u8[16384]{0}', space=vmem, size = 0x4000, scoped, tag = 'input window, operand 2, single buffered']
    #allocation4 [shape = 's32[1]{0}', space=sflag, size = 0x4, scoped, tag = 'scoped memory for tpu_custom_call.1']
    #allocation5 [shape = 's32[1]{0}', space=sflag, size = 0x4, scoped, tag = 'scoped memory for tpu_custom_call.1']
    #allocation6 [shape = 'u8[32768]{0}', space=vmem, size = 0x8000, scoped, tag = 'input window, operand 3, single buffered']
    #allocation7 [shape = 's32[1]{0}', space=sflag, size = 0x4, scoped, tag = 'scoped memory for tpu_custom_call.1']
    #allocation8 [shape = 'u8[2048]{0}', space=vmem, size = 0x800, scoped, tag = 'input window, operand 5, single buffered']
    #allocation9 [shape = 'u8[2048]{0}', space=vmem, size = 0x800, scoped, tag = 'input window, operand 6, single buffered']
    #allocation10 [shape = 's32[1]{0}', space=sflag, size = 0x4, scoped, tag = 'scoped memory for tpu_custom_call.1']
    #allocation11 [shape = 'u8[8192]{0}', space=vmem, size = 0x2000, scoped, tag = 'output window, operand 0, single buffered']
    #allocation12 [shape = 'u8[2048]{0}', space=vmem, size = 0x800, scoped, tag = 'output window, operand 1, single buffered']
    #allocation13 [shape = 's32[1]{0}', space=sflag, size = 0x4, scoped, tag = 'scoped memory for tpu_custom_call.1']
    #allocation14 [shape = 'u8[2048]{0}', space=vmem, size = 0x800, scoped, tag = 'output window, operand 2, single buffered']
    %15 = vsyncpa [#allocation4], 0
    %16 = vsyncpa [#allocation7], 0
    %17 = vsyncpa [#allocation10], 0
    %18 = vsyncpa [#allocation5], 0
    %19 = vsyncpa [#allocation13], 0
    // Predicated region
    $region2: #{tpu_custom_call.1} parent=1 // pred_check
      _
    $region3: #{tpu_custom_call.1} parent=1 // pred_check_branch
      %21 = sbr.rel (0) target = $region5
    $region4: #{tpu_custom_call.1} parent=1 // pred_region
      _
    $region5: #{tpu_custom_call.1} parent=1 // pred_fallthru
      _
    // Predicated region
    $region6: #{tpu_custom_call.1} parent=1 // pred_check
      _
    $region7: #{tpu_custom_call.1} parent=1 // pred_check_branch
      %23 = sbr.rel (0) target = $region9
    $region8: #{tpu_custom_call.1} parent=1 // pred_region
      _
    $region9: #{tpu_custom_call.1} parent=1 // pred_fallthru
      _
    // Predicated region
    $region10: #{tpu_custom_call.1} parent=1 // pred_check
      _
    $region11: #{tpu_custom_call.1} parent=1 // pred_check_branch
      %25 = sbr.rel (0) target = $region13
    $region12: #{tpu_custom_call.1} parent=1 // pred_region
      %27 = vsyncadd [#allocation4], 0
      %s28 = sshll.u32 %s2, 4
      %s29 = int_to_ptr.hbm [resolvable:$true] %s28
      %s30 = sshll.u32 [#allocation3], 4
      %s31 = int_to_ptr.vmem [resolvable:$true] %s30
      %36 = dma.hbm_to_vmem [thread:$0]  %s29, 512, %s31, [#allocation4], 128, 128, 8
    $region13: #{tpu_custom_call.1} parent=1 // pred_fallthru
      _
    // Predicated region
    $region14: #{tpu_custom_call.1} parent=1 // pred_check
      _
    $region15: #{tpu_custom_call.1} parent=1 // pred_check_branch
      %38 = sbr.rel (0) target = $region17
    $region16: #{tpu_custom_call.1} parent=1 // pred_region
      %40 = vsyncadd [#allocation7], 0
      %s41 = sshll.u32 %s3, 4
      %s42 = int_to_ptr.hbm [resolvable:$true] %s41
      %s43 = sshll.u32 [#allocation6], 4
      %s44 = int_to_ptr.vmem [resolvable:$true] %s43
      %49 = dma.hbm_to_vmem [thread:$0]  %s42, 1024, %s44, [#allocation7], 128, 128, 8
    $region17: #{tpu_custom_call.1} parent=1 // pred_fallthru
      _
    // Predicated region
    $region18: #{tpu_custom_call.1} parent=1 // pred_check
      _
    $region19: #{tpu_custom_call.1} parent=1 // pred_check_branch
      %51 = sbr.rel (0) target = $region21
    $region20: #{tpu_custom_call.1} parent=1 // pred_region
      _
    $region21: #{tpu_custom_call.1} parent=1 // pred_fallthru
      _
    // Predicated region
    $region22: #{tpu_custom_call.1} parent=1 // pred_check
      _
    $region23: #{tpu_custom_call.1} parent=1 // pred_check_branch
      %53 = sbr.rel (0) target = $region25
    $region24: #{tpu_custom_call.1} parent=1 // pred_region
      %55 = vsyncadd [#allocation7], 0
      %s56 = sshll.u32 %s5, 4
      %s57 = int_to_ptr.hbm [resolvable:$true] %s56
      %s58 = sshll.u32 [#allocation8], 4
      %s59 = int_to_ptr.vmem [resolvable:$true] %s58
      %64 = dma.hbm_to_vmem [thread:$0]  %s57, 64, %s59, [#allocation7], 32, 32, 2
    $region25: #{tpu_custom_call.1} parent=1 // pred_fallthru
      _
    // Predicated region
    $region26: #{tpu_custom_call.1} parent=1 // pred_check
      _
    $region27: #{tpu_custom_call.1} parent=1 // pred_check_branch
      %66 = sbr.rel (0) target = $region29
    $region28: #{tpu_custom_call.1} parent=1 // pred_region
      %68 = vsyncadd [#allocation10], 0
      %s69 = sshll.u32 %s6, 4
      %s70 = int_to_ptr.hbm [resolvable:$true] %s69
      %s71 = sshll.u32 [#allocation9], 4
      %s72 = int_to_ptr.vmem [resolvable:$true] %s71
      %77 = dma.hbm_to_vmem [thread:$0]  %s70, 64, %s72, [#allocation10], 32, 32, 2
    $region29: #{tpu_custom_call.1} parent=1 // pred_fallthru
      _
    // Predicated region
    $region30: #{tpu_custom_call.1} parent=1 // pred_check
      _
    $region31: #{tpu_custom_call.1} parent=1 // pred_check_branch
      %79 = sbr.rel (0) target = $region33
    $region32: #{tpu_custom_call.1} parent=1 // pred_region
      %81 = dma.done [#allocation4], 512
    $region33: #{tpu_custom_call.1} parent=1 // pred_fallthru
      _
    // Predicated region
    $region34: #{tpu_custom_call.1} parent=1 // pred_check
      _
    $region35: #{tpu_custom_call.1} parent=1 // pred_check_branch
      %83 = sbr.rel (0) target = $region37
    $region36: #{tpu_custom_call.1} parent=1 // pred_region
      %85 = dma.done [#allocation7], 1024
    $region37: #{tpu_custom_call.1} parent=1 // pred_fallthru
      _
    // Predicated region
    $region38: #{tpu_custom_call.1} parent=1 // pred_check
      _
    $region39: #{tpu_custom_call.1} parent=1 // pred_check_branch
      %87 = sbr.rel (0) target = $region41
    $region40: #{tpu_custom_call.1} parent=1 // pred_region
      %89 = dma.done [#allocation7], 64
    $region41: #{tpu_custom_call.1} parent=1 // pred_fallthru
      _
    // Predicated region
    $region42: #{tpu_custom_call.1} parent=1 // pred_check
      _
    $region43: #{tpu_custom_call.1} parent=1 // pred_check_branch
      %91 = sbr.rel (0) target = $region45
    $region44: #{tpu_custom_call.1} parent=1 // pred_region
      %93 = dma.done [#allocation10], 64
    $region45: #{tpu_custom_call.1} parent=1 // pred_fallthru
      _
    %v94 = vld [vmem:[%s4] sm:$0x1]
    %v95 = vld [vmem:[%s0] sm:$0xff]
    %v96 = vld [vmem:[%s0 + $0x8] sm:$0xff]
    %v97 = vld [vmem:[%s1] sm:$0x1]
    %99 = vset.pattern.permute.xlu0 0
    %100 = vperm.xlu0 %99, %v95
    %v101 = vpop.permute.xlu0 %100
    %104 = vset.pattern.permute.xlu0 0
    %105 = vperm.xlu0 %104, %v96
    %v106 = vpop.permute.xlu0 %105
    %v109 = vperm.slane %v97, 0
    %v111 = vmul.f32 %v101, %v109
    %v112 = vmul.f32 %v106, %v109
    %v114 = vperm.slane %v94, 0
    %v116 = vadd.f32 %v111, %v114
    %v117 = vadd.f32 %v112, %v114
    %118 = vst [vmem:[#allocation2] sm:$0xff] %v116
    %119 = vst [vmem:[#allocation2 + $0x8] sm:$0xff] %v117
    %v120 = vld [vmem:[#allocation6] sm:$0xff]
    %v121 = vld [vmem:[#allocation6 + $0x8] sm:$0xff]
    %v122 = vld [vmem:[#allocation6 + $0x10] sm:$0xff]
    %v123 = vld [vmem:[#allocation6 + $0x18] sm:$0xff]
    %v124 = vld [vmem:[#allocation8] sm:$0x3]
    %v125 = vld [vmem:[#allocation9] sm:$0x3]
    %v126 = vld [vmem:[#allocation2] sm:$0x3]
    %vm127 = vcmask 261120
    %v129 = vsel %vm127, %v124, 0
    %131 = vmatpush.msra.mxu0 0.0
    %132 = vmatpush.msra.mxu0 0.0
    %133 = vmatpush.msra.mxu0 0.0
    %134 = vmatpush.msra.mxu0 0.0
    %135 = vmatpush.msra.mxu0 0.0
    %136 = vmatpush.msra.mxu0 0.0
    %137 = vmatpush.msra.mxu0 0.0
    %138 = vmatpush.msra.mxu0 0.0
    %139 = vmatpush.msra.mxu0 0.0
    %140 = vmatpush.msra.mxu0 0.0
    %141 = vmatpush.msra.mxu0 0.0
    %142 = vmatpush.msra.mxu0 0.0
    %143 = vmatpush.msra.mxu0 %v123
    %144 = vmatpush.msra.mxu0 %v122
    %145 = vmatpush.msra.mxu0 %v121
    %146 = vmatpush.msra.mxu0 %v120
    %147 = vmatmul.f32.gmra.mxu0 %v129
    %v148 = vpop.f32.mrf.mxu0
    %v149 = vadd.f32 0.0, %v148
    %150 = vdwg.mxu0
    %v151 = vadd.f32 %v126, %v149
    %v152 = vxor.u32 %v151, 2147483648
    %v153 = vmul.f32 %v152, 1.442695
    %v154 = vpow.pop %v153
    %v155 = vadd.f32 %v154, 1.0
    %v156 = vrcp.pop %v155
    %v157 = vmul.f32 %v155, %v156
    %v158 = vsub.f32 1.0, %v157
    %v159 = vmul.f32 %v156, %v158
    %v160 = vadd.f32 %v156, %v159
    %vm161 = vweird.f32 %v155
    %vm162 = vweird.f32 %v156
    %vm163 = vmor %vm161, %vm162
    %v164 = vsel %vm163, %v156, %v160
    %v165 = vand.u32 2147483647, %v155
    %vm166 = vcmp.eq.f32.partialorder %v165, 8.507059e+37
    %v167 = vand.u32 %v155, 2147483648
    %v168 = vor.u32 1.1754944e-38, %v167
    %v169 = vsel %vm166, %v168, %v164
    %v170 = vmul.f32 1.0, %v169
    %v171 = vtanh.pop %v151
    %173 = vrot.lane.b32.xlu0 %v125, 32
    %v174 = vpop.permute.xlu0 %173
    %v176 = vmul.f32 %v170, %v174
    %178 = vrot.lane.b32.xlu0 %v171, 64
    %v179 = vpop.permute.xlu0 %178
    %v181 = vmul.f32 %v170, %v179
    %183 = vrot.lane.b32.xlu0 %v181, 32
    %v184 = vpop.permute.xlu0 %183
    %v186 = vadd.f32 %v176, %v184
    %v187 = vtanh.pop %v186
    %189 = vrot.lane.b32.xlu0 %v187, 64
    %v190 = vpop.permute.xlu0 %189
    %v192 = vmul.f32 %v170, %v190
    %194 = vrot.lane.b32.xlu0 %v192, 32
    %v195 = vpop.permute.xlu0 %194
    %vm197 = vcmask 254976
    %198 = vst.msk [vmem:[#allocation11] sm:$0x3] %vm197, %v195
    %v199 = vld [vmem:[#allocation2 + $0x2] sm:$0x3]
    %v200 = vsel %vm127, %v195, 0
    %202 = vmatpush.msra.mxu0 0.0
    %203 = vmatpush.msra.mxu0 0.0
    %204 = vmatpush.msra.mxu0 0.0
    %205 = vmatpush.msra.mxu0 0.0
    %206 = vmatpush.msra.mxu0 0.0
    %207 = vmatpush.msra.mxu0 0.0
    %208 = vmatpush.msra.mxu0 0.0
    %209 = vmatpush.msra.mxu0 0.0
    %210 = vmatpush.msra.mxu0 0.0
    %211 = vmatpush.msra.mxu0 0.0
    %212 = vmatpush.msra.mxu0 0.0
    %213 = vmatpush.msra.mxu0 0.0
    %214 = vmatpush.msra.mxu0 %v123
    %215 = vmatpush.msra.mxu0 %v122
    %216 = vmatpush.msra.mxu0 %v121
    %217 = vmatpush.msra.mxu0 %v120
    %218 = vmatmul.f32.gmra.mxu0 %v200
    %v219 = vpop.f32.mrf.mxu0
    %v220 = vadd.f32 0.0, %v219
    %221 = vdwg.mxu0
    %v222 = vadd.f32 %v199, %v220
    %v223 = vxor.u32 %v222, 2147483648
    %v224 = vmul.f32 %v223, 1.442695
    %v225 = vpow.pop %v224
    %v226 = vadd.f32 %v225, 1.0
    %v227 = vrcp.pop %v226
    %v228 = vmul.f32 %v226, %v227
    %v229 = vsub.f32 1.0, %v228
    %v230 = vmul.f32 %v227, %v229
    %v231 = vadd.f32 %v227, %v230
    %vm232 = vweird.f32 %v226
    %vm233 = vweird.f32 %v227
    %vm234 = vmor %vm232, %vm233
    %v235 = vsel %vm234, %v227, %v231
    %v236 = vand.u32 2147483647, %v226
    %vm237 = vcmp.eq.f32.partialorder %v236, 8.507059e+37
    %v238 = vand.u32 %v226, 2147483648
    %v239 = vor.u32 1.1754944e-38, %v238
    %v240 = vsel %vm237, %v239, %v235
    %v241 = vmul.f32 1.0, %v240
    %v242 = vtanh.pop %v222
    %v243 = vmul.f32 %v241, %v186
    %245 = vrot.lane.b32.xlu0 %v242, 64
    %v246 = vpop.permute.xlu0 %245
    %v248 = vmul.f32 %v241, %v246
    %250 = vrot.lane.b32.xlu0 %v248, 32
    %v251 = vpop.permute.xlu0 %250
    %v253 = vadd.f32 %v243, %v251
    %v254 = vtanh.pop %v253
    %256 = vrot.lane.b32.xlu0 %v254, 64
    %v257 = vpop.permute.xlu0 %256
    %v259 = vmul.f32 %v241, %v257
    %261 = vrot.lane.b32.xlu0 %v259, 32
    %v262 = vpop.permute.xlu0 %261
    %264 = vst.msk [vmem:[#allocation11 + $0x2] sm:$0x3] %vm197, %v262
    %v265 = vld [vmem:[#allocation2 + $0x4] sm:$0x3]
    %v266 = vsel %vm127, %v262, 0
    %268 = vmatpush.msra.mxu0 0.0
    %269 = vmatpush.msra.mxu0 0.0
    %270 = vmatpush.msra.mxu0 0.0
    %271 = vmatpush.msra.mxu0 0.0
    %272 = vmatpush.msra.mxu0 0.0
    %273 = vmatpush.msra.mxu0 0.0
    %274 = vmatpush.msra.mxu0 0.0
    %275 = vmatpush.msra.mxu0 0.0
    %276 = vmatpush.msra.mxu0 0.0
    %277 = vmatpush.msra.mxu0 0.0
    %278 = vmatpush.msra.mxu0 0.0
    %279 = vmatpush.msra.mxu0 0.0
    %280 = vmatpush.msra.mxu0 %v123
    %281 = vmatpush.msra.mxu0 %v122
    %282 = vmatpush.msra.mxu0 %v121
    %283 = vmatpush.msra.mxu0 %v120
    %284 = vmatmul.f32.gmra.mxu0 %v266
    %v285 = vpop.f32.mrf.mxu0
    %v286 = vadd.f32 0.0, %v285
    %287 = vdwg.mxu0
    %v288 = vadd.f32 %v265, %v286
    %v289 = vxor.u32 %v288, 2147483648
    %v290 = vmul.f32 %v289, 1.442695
    %v291 = vpow.pop %v290
    %v292 = vadd.f32 %v291, 1.0
    %v293 = vrcp.pop %v292
    %v294 = vmul.f32 %v292, %v293
    %v295 = vsub.f32 1.0, %v294
    %v296 = vmul.f32 %v293, %v295
    %v297 = vadd.f32 %v293, %v296
    %vm298 = vweird.f32 %v292
    %vm299 = vweird.f32 %v293
    %vm300 = vmor %vm298, %vm299
    %v301 = vsel %vm300, %v293, %v297
    %v302 = vand.u32 2147483647, %v292
    %vm303 = vcmp.eq.f32.partialorder %v302, 8.507059e+37
    %v304 = vand.u32 %v292, 2147483648
    %v305 = vor.u32 1.1754944e-38, %v304
    %v306 = vsel %vm303, %v305, %v301
    %v307 = vmul.f32 1.0, %v306
    %v308 = vtanh.pop %v288
    %v309 = vmul.f32 %v307, %v253
    %311 = vrot.lane.b32.xlu0 %v308, 64
    %v312 = vpop.permute.xlu0 %311
    %v314 = vmul.f32 %v307, %v312
    %316 = vrot.lane.b32.xlu0 %v314, 32
    %v317 = vpop.permute.xlu0 %316
    %v319 = vadd.f32 %v309, %v317
    %v320 = vtanh.pop %v319
    %322 = vrot.lane.b32.xlu0 %v320, 64
    %v323 = vpop.permute.xlu0 %322
    %v325 = vmul.f32 %v307, %v323
    %327 = vrot.lane.b32.xlu0 %v325, 32
    %v328 = vpop.permute.xlu0 %327
    %330 = vst.msk [vmem:[#allocation11 + $0x4] sm:$0x3] %vm197, %v328
    %v331 = vld [vmem:[#allocation2 + $0x6] sm:$0x3]
    %v332 = vsel %vm127, %v328, 0
    %334 = vmatpush.msra.mxu0 0.0
    %335 = vmatpush.msra.mxu0 0.0
    %336 = vmatpush.msra.mxu0 0.0
    %337 = vmatpush.msra.mxu0 0.0
    %338 = vmatpush.msra.mxu0 0.0
    %339 = vmatpush.msra.mxu0 0.0
    %340 = vmatpush.msra.mxu0 0.0
    %341 = vmatpush.msra.mxu0 0.0
    %342 = vmatpush.msra.mxu0 0.0
    %343 = vmatpush.msra.mxu0 0.0
    %344 = vmatpush.msra.mxu0 0.0
    %345 = vmatpush.msra.mxu0 0.0
    %346 = vmatpush.msra.mxu0 %v123
    %347 = vmatpush.msra.mxu0 %v122
    %348 = vmatpush.msra.mxu0 %v121
    %349 = vmatpush.msra.mxu0 %v120
    %350 = vmatmul.f32.gmra.mxu0 %v332
    %v351 = vpop.f32.mrf.mxu0
    %v352 = vadd.f32 0.0, %v351
    %353 = vdwg.mxu0
    %v354 = vadd.f32 %v331, %v352
    %v355 = vxor.u32 %v354, 2147483648
    %v356 = vmul.f32 %v355, 1.442695
    %v357 = vpow.pop %v356
    %v358 = vadd.f32 %v357, 1.0
    %v359 = vrcp.pop %v358
    %v360 = vmul.f32 %v358, %v359
    %v361 = vsub.f32 1.0, %v360
    %v362 = vmul.f32 %v359, %v361
    %v363 = vadd.f32 %v359, %v362
    %vm364 = vweird.f32 %v358
    %vm365 = vweird.f32 %v359
    %vm366 = vmor %vm364, %vm365
    %v367 = vsel %vm366, %v359, %v363
    %v368 = vand.u32 2147483647, %v358
    %vm369 = vcmp.eq.f32.partialorder %v368, 8.507059e+37
    %v370 = vand.u32 %v358, 2147483648
    %v371 = vor.u32 1.1754944e-38, %v370
    %v372 = vsel %vm369, %v371, %v367
    %v373 = vmul.f32 1.0, %v372
    %v374 = vtanh.pop %v354
    %v375 = vmul.f32 %v373, %v319
    %377 = vrot.lane.b32.xlu0 %v374, 64
    %v378 = vpop.permute.xlu0 %377
    %v380 = vmul.f32 %v373, %v378
    %382 = vrot.lane.b32.xlu0 %v380, 32
    %v383 = vpop.permute.xlu0 %382
    %v385 = vadd.f32 %v375, %v383
    %v386 = vtanh.pop %v385
    %388 = vrot.lane.b32.xlu0 %v386, 64
    %v389 = vpop.permute.xlu0 %388
    %v391 = vmul.f32 %v373, %v389
    %393 = vrot.lane.b32.xlu0 %v391, 32
    %v394 = vpop.permute.xlu0 %393
    %396 = vst.msk [vmem:[#allocation11 + $0x6] sm:$0x3] %vm197, %v394
    %v397 = vld [vmem:[#allocation2 + $0x8] sm:$0x3]
    %v398 = vsel %vm127, %v394, 0
    %400 = vmatpush.msra.mxu0 0.0
    %401 = vmatpush.msra.mxu0 0.0
    %402 = vmatpush.msra.mxu0 0.0
    %403 = vmatpush.msra.mxu0 0.0
    %404 = vmatpush.msra.mxu0 0.0
    %405 = vmatpush.msra.mxu0 0.0
    %406 = vmatpush.msra.mxu0 0.0
    %407 = vmatpush.msra.mxu0 0.0
    %408 = vmatpush.msra.mxu0 0.0
    %409 = vmatpush.msra.mxu0 0.0
    %410 = vmatpush.msra.mxu0 0.0
    %411 = vmatpush.msra.mxu0 0.0
    %412 = vmatpush.msra.mxu0 %v123
    %413 = vmatpush.msra.mxu0 %v122
    %414 = vmatpush.msra.mxu0 %v121
    %415 = vmatpush.msra.mxu0 %v120
    %416 = vmatmul.f32.gmra.mxu0 %v398
    %v417 = vpop.f32.mrf.mxu0
    %v418 = vadd.f32 0.0, %v417
    %419 = vdwg.mxu0
    %v420 = vadd.f32 %v397, %v418
    %v421 = vxor.u32 %v420, 2147483648
    %v422 = vmul.f32 %v421, 1.442695
    %v423 = vpow.pop %v422
    %v424 = vadd.f32 %v423, 1.0
    %v425 = vrcp.pop %v424
    %v426 = vmul.f32 %v424, %v425
    %v427 = vsub.f32 1.0, %v426
    %v428 = vmul.f32 %v425, %v427
    %v429 = vadd.f32 %v425, %v428
    %vm430 = vweird.f32 %v424
    %vm431 = vweird.f32 %v425
    %vm432 = vmor %vm430, %vm431
    %v433 = vsel %vm432, %v425, %v429
    %v434 = vand.u32 2147483647, %v424
    %vm435 = vcmp.eq.f32.partialorder %v434, 8.507059e+37
    %v436 = vand.u32 %v424, 2147483648
    %v437 = vor.u32 1.1754944e-38, %v436
    %v438 = vsel %vm435, %v437, %v433
    %v439 = vmul.f32 1.0, %v438
    %v440 = vtanh.pop %v420
    %v441 = vmul.f32 %v439, %v385
    %443 = vrot.lane.b32.xlu0 %v440, 64
    %v444 = vpop.permute.xlu0 %443
    %v446 = vmul.f32 %v439, %v444
    %448 = vrot.lane.b32.xlu0 %v446, 32
    %v449 = vpop.permute.xlu0 %448
    %v451 = vadd.f32 %v441, %v449
    %v452 = vtanh.pop %v451
    %454 = vrot.lane.b32.xlu0 %v452, 64
    %v455 = vpop.permute.xlu0 %454
    %v457 = vmul.f32 %v439, %v455
    %459 = vrot.lane.b32.xlu0 %v457, 32
    %v460 = vpop.permute.xlu0 %459
    %462 = vst.msk [vmem:[#allocation11 + $0x8] sm:$0x3] %vm197, %v460
    %v463 = vld [vmem:[#allocation2 + $0xa] sm:$0x3]
    %v464 = vsel %vm127, %v460, 0
    %466 = vmatpush.msra.mxu0 0.0
    %467 = vmatpush.msra.mxu0 0.0
    %468 = vmatpush.msra.mxu0 0.0
    %469 = vmatpush.msra.mxu0 0.0
    %470 = vmatpush.msra.mxu0 0.0
    %471 = vmatpush.msra.mxu0 0.0
    %472 = vmatpush.msra.mxu0 0.0
    %473 = vmatpush.msra.mxu0 0.0
    %474 = vmatpush.msra.mxu0 0.0
    %475 = vmatpush.msra.mxu0 0.0
    %476 = vmatpush.msra.mxu0 0.0
    %477 = vmatpush.msra.mxu0 0.0
    %478 = vmatpush.msra.mxu0 %v123
    %479 = vmatpush.msra.mxu0 %v122
    %480 = vmatpush.msra.mxu0 %v121
    %481 = vmatpush.msra.mxu0 %v120
    %482 = vmatmul.f32.gmra.mxu0 %v464
    %v483 = vpop.f32.mrf.mxu0
    %v484 = vadd.f32 0.0, %v483
    %485 = vdwg.mxu0
    %v486 = vadd.f32 %v463, %v484
    %v487 = vxor.u32 %v486, 2147483648
    %v488 = vmul.f32 %v487, 1.442695
    %v489 = vpow.pop %v488
    %v490 = vadd.f32 %v489, 1.0
    %v491 = vrcp.pop %v490
    %v492 = vmul.f32 %v490, %v491
    %v493 = vsub.f32 1.0, %v492
    %v494 = vmul.f32 %v491, %v493
    %v495 = vadd.f32 %v491, %v494
    %vm496 = vweird.f32 %v490
    %vm497 = vweird.f32 %v491
    %vm498 = vmor %vm496, %vm497
    %v499 = vsel %vm498, %v491, %v495
    %v500 = vand.u32 2147483647, %v490
    %vm501 = vcmp.eq.f32.partialorder %v500, 8.507059e+37
    %v502 = vand.u32 %v490, 2147483648
    %v503 = vor.u32 1.1754944e-38, %v502
    %v504 = vsel %vm501, %v503, %v499
    %v505 = vmul.f32 1.0, %v504
    %v506 = vtanh.pop %v486
    %v507 = vmul.f32 %v505, %v451
    %509 = vrot.lane.b32.xlu0 %v506, 64
    %v510 = vpop.permute.xlu0 %509
    %v512 = vmul.f32 %v505, %v510
    %514 = vrot.lane.b32.xlu0 %v512, 32
    %v515 = vpop.permute.xlu0 %514
    %v517 = vadd.f32 %v507, %v515
    %v518 = vtanh.pop %v517
    %520 = vrot.lane.b32.xlu0 %v518, 64
    %v521 = vpop.permute.xlu0 %520
    %v523 = vmul.f32 %v505, %v521
    %525 = vrot.lane.b32.xlu0 %v523, 32
    %v526 = vpop.permute.xlu0 %525
    %528 = vst.msk [vmem:[#allocation11 + $0xa] sm:$0x3] %vm197, %v526
    %v529 = vld [vmem:[#allocation2 + $0xc] sm:$0x3]
    %v530 = vsel %vm127, %v526, 0
    %532 = vmatpush.msra.mxu0 0.0
    %533 = vmatpush.msra.mxu0 0.0
    %534 = vmatpush.msra.mxu0 0.0
    %535 = vmatpush.msra.mxu0 0.0
    %536 = vmatpush.msra.mxu0 0.0
    %537 = vmatpush.msra.mxu0 0.0
    %538 = vmatpush.msra.mxu0 0.0
    %539 = vmatpush.msra.mxu0 0.0
    %540 = vmatpush.msra.mxu0 0.0
    %541 = vmatpush.msra.mxu0 0.0
    %542 = vmatpush.msra.mxu0 0.0
    %543 = vmatpush.msra.mxu0 0.0
    %544 = vmatpush.msra.mxu0 %v123
    %545 = vmatpush.msra.mxu0 %v122
    %546 = vmatpush.msra.mxu0 %v121
    %547 = vmatpush.msra.mxu0 %v120
    %548 = vmatmul.f32.gmra.mxu0 %v530
    %v549 = vpop.f32.mrf.mxu0
    %v550 = vadd.f32 0.0, %v549
    %551 = vdwg.mxu0
    %v552 = vadd.f32 %v529, %v550
    %v553 = vxor.u32 %v552, 2147483648
    %v554 = vmul.f32 %v553, 1.442695
    %v555 = vpow.pop %v554
    %v556 = vadd.f32 %v555, 1.0
    %v557 = vrcp.pop %v556
    %v558 = vmul.f32 %v556, %v557
    %v559 = vsub.f32 1.0, %v558
    %v560 = vmul.f32 %v557, %v559
    %v561 = vadd.f32 %v557, %v560
    %vm562 = vweird.f32 %v556
    %vm563 = vweird.f32 %v557
    %vm564 = vmor %vm562, %vm563
    %v565 = vsel %vm564, %v557, %v561
    %v566 = vand.u32 2147483647, %v556
    %vm567 = vcmp.eq.f32.partialorder %v566, 8.507059e+37
    %v568 = vand.u32 %v556, 2147483648
    %v569 = vor.u32 1.1754944e-38, %v568
    %v570 = vsel %vm567, %v569, %v565
    %v571 = vmul.f32 1.0, %v570
    %v572 = vtanh.pop %v552
    %v573 = vmul.f32 %v571, %v517
    %575 = vrot.lane.b32.xlu0 %v572, 64
    %v576 = vpop.permute.xlu0 %575
    %v578 = vmul.f32 %v571, %v576
    %580 = vrot.lane.b32.xlu0 %v578, 32
    %v581 = vpop.permute.xlu0 %580
    %v583 = vadd.f32 %v573, %v581
    %v584 = vtanh.pop %v583
    %586 = vrot.lane.b32.xlu0 %v584, 64
    %v587 = vpop.permute.xlu0 %586
    %v589 = vmul.f32 %v571, %v587
    %591 = vrot.lane.b32.xlu0 %v589, 32
    %v592 = vpop.permute.xlu0 %591
    %594 = vst.msk [vmem:[#allocation11 + $0xc] sm:$0x3] %vm197, %v592
    %v595 = vld [vmem:[#allocation2 + $0xe] sm:$0x3]
    %v596 = vsel %vm127, %v592, 0
    %598 = vmatpush.msra.mxu0 0.0
    %599 = vmatpush.msra.mxu0 0.0
    %600 = vmatpush.msra.mxu0 0.0
    %601 = vmatpush.msra.mxu0 0.0
    %602 = vmatpush.msra.mxu0 0.0
    %603 = vmatpush.msra.mxu0 0.0
    %604 = vmatpush.msra.mxu0 0.0
    %605 = vmatpush.msra.mxu0 0.0
    %606 = vmatpush.msra.mxu0 0.0
    %607 = vmatpush.msra.mxu0 0.0
    %608 = vmatpush.msra.mxu0 0.0
    %609 = vmatpush.msra.mxu0 0.0
    %610 = vmatpush.msra.mxu0 %v123
    %611 = vmatpush.msra.mxu0 %v122
    %612 = vmatpush.msra.mxu0 %v121
    %613 = vmatpush.msra.mxu0 %v120
    %614 = vmatmul.f32.gmra.mxu0 %v596
    %v615 = vpop.f32.mrf.mxu0
    %v616 = vadd.f32 0.0, %v615
    %617 = vdwg.mxu0
    %v618 = vadd.f32 %v595, %v616
    %v619 = vxor.u32 %v618, 2147483648
    %v620 = vmul.f32 %v619, 1.442695
    %v621 = vpow.pop %v620
    %v622 = vadd.f32 %v621, 1.0
    %v623 = vrcp.pop %v622
    %v624 = vmul.f32 %v622, %v623
    %v625 = vsub.f32 1.0, %v624
    %v626 = vmul.f32 %v623, %v625
    %v627 = vadd.f32 %v623, %v626
    %vm628 = vweird.f32 %v622
    %vm629 = vweird.f32 %v623
    %vm630 = vmor %vm628, %vm629
    %v631 = vsel %vm630, %v623, %v627
    %v632 = vand.u32 2147483647, %v622
    %vm633 = vcmp.eq.f32.partialorder %v632, 8.507059e+37
    %v634 = vand.u32 %v622, 2147483648
    %v635 = vor.u32 1.1754944e-38, %v634
    %v636 = vsel %vm633, %v635, %v631
    %v637 = vmul.f32 1.0, %v636
    %v638 = vtanh.pop %v618
    %v639 = vmul.f32 %v637, %v583
    %641 = vrot.lane.b32.xlu0 %v638, 64
    %v642 = vpop.permute.xlu0 %641
    %v644 = vmul.f32 %v637, %v642
    %646 = vrot.lane.b32.xlu0 %v644, 32
    %v647 = vpop.permute.xlu0 %646
    %v649 = vadd.f32 %v639, %v647
    %v650 = vtanh.pop %v649
    %652 = vrot.lane.b32.xlu0 %v650, 64
    %v653 = vpop.permute.xlu0 %652
    %v655 = vmul.f32 %v637, %v653
    %657 = vrot.lane.b32.xlu0 %v655, 32
    %v658 = vpop.permute.xlu0 %657
    %660 = vst.msk [vmem:[#allocation11 + $0xe] sm:$0x3] %vm197, %v658
    %661 = vst.msk [vmem:[#allocation12] sm:$0x3] %vm197, %v658
    %663 = vrot.lane.b32.xlu0 %v649, 96
    %v664 = vpop.permute.xlu0 %663
    %666 = vst.msk [vmem:[#allocation14] sm:$0x3] %vm197, %v664
    %s667 = scalar_lea.vmem %s4, 1
    %v668 = vld [vmem:[%s667] sm:$0x1]
    %v669 = vld [vmem:[#allocation11] sm:$0xff]
    %v670 = vld [vmem:[#allocation11 + $0x8] sm:$0xff]
    %v671 = vld [vmem:[#allocation3] sm:$0xff]
    %v672 = vld [vmem:[#allocation3 + $0x8] sm:$0xff]
    %v673 = vld [vmem:[#allocation3 + $0x10] sm:$0xff]
    %v674 = vld [vmem:[#allocation3 + $0x18] sm:$0xff]
    %v676 = vperm.slane %v668, 0
    %v679 = vsel %vm127, %v669, 0
    %v682 = vsel %vm127, %v670, 0
    %684 = vmatpush.msra.mxu0 0.0
    %685 = vmatpush.msra.mxu0 0.0
    %686 = vmatpush.msra.mxu0 0.0
    %687 = vmatpush.msra.mxu0 0.0
    %688 = vmatpush.msra.mxu0 0.0
    %689 = vmatpush.msra.mxu0 0.0
    %690 = vmatpush.msra.mxu0 0.0
    %691 = vmatpush.msra.mxu0 0.0
    %692 = vmatpush.msra.mxu0 0.0
    %693 = vmatpush.msra.mxu0 0.0
    %694 = vmatpush.msra.mxu0 0.0
    %695 = vmatpush.msra.mxu0 0.0
    %696 = vmatpush.msra.mxu0 %v674
    %697 = vmatpush.msra.mxu0 %v673
    %698 = vmatpush.msra.mxu0 %v672
    %699 = vmatpush.msra.mxu0 %v671
    %700 = vmatmul.f32.gmra.mxu0 %v679
    %v701 = vpop.f32.mrf.mxu0
    %v702 = vadd.f32 %v676, %v701
    %703 = vmatmul.f32.gmra.mxu0 %v682
    %v704 = vpop.f32.mrf.mxu0
    %v705 = vadd.f32 %v676, %v704
    %706 = vdwg.mxu0
    %707 = vst [vmem:[#allocation2] sm:$0xff] %v702
    %708 = vst [vmem:[#allocation2 + $0x8] sm:$0xff] %v705
    %s709 = scalar_lea.vmem [#allocation6], 32
    %v710 = vld [vmem:[%s709] sm:$0xff]
    %v711 = vld [vmem:[%s709 + $0x8] sm:$0xff]
    %v712 = vld [vmem:[%s709 + $0x10] sm:$0xff]
    %v713 = vld [vmem:[%s709 + $0x18] sm:$0xff]
    %s714 = scalar_lea.vmem [#allocation8], 2
    %v715 = vld [vmem:[%s714] sm:$0x3]
    %s716 = scalar_lea.vmem [#allocation9], 2
    %v717 = vld [vmem:[%s716] sm:$0x3]
    %v718 = vld [vmem:[#allocation2] sm:$0x3]
    %v720 = vsel %vm127, %v715, 0
    %722 = vmatpush.msra.mxu0 0.0
    %723 = vmatpush.msra.mxu0 0.0
    %724 = vmatpush.msra.mxu0 0.0
    %725 = vmatpush.msra.mxu0 0.0
    %726 = vmatpush.msra.mxu0 0.0
    %727 = vmatpush.msra.mxu0 0.0
    %728 = vmatpush.msra.mxu0 0.0
    %729 = vmatpush.msra.mxu0 0.0
    %730 = vmatpush.msra.mxu0 0.0
    %731 = vmatpush.msra.mxu0 0.0
    %732 = vmatpush.msra.mxu0 0.0
    %733 = vmatpush.msra.mxu0 0.0
    %734 = vmatpush.msra.mxu0 %v713
    %735 = vmatpush.msra.mxu0 %v712
    %736 = vmatpush.msra.mxu0 %v711
    %737 = vmatpush.msra.mxu0 %v710
    %738 = vmatmul.f32.gmra.mxu0 %v720
    %v739 = vpop.f32.mrf.mxu0
    %v740 = vadd.f32 0.0, %v739
    %741 = vdwg.mxu0
    %v742 = vadd.f32 %v718, %v740
    %v743 = vxor.u32 %v742, 2147483648
    %v744 = vmul.f32 %v743, 1.442695
    %v745 = vpow.pop %v744
    %v746 = vadd.f32 %v745, 1.0
    %v747 = vrcp.pop %v746
    %v748 = vmul.f32 %v746, %v747
    %v749 = vsub.f32 1.0, %v748
    %v750 = vmul.f32 %v747, %v749
    %v751 = vadd.f32 %v747, %v750
    %vm752 = vweird.f32 %v746
    %vm753 = vweird.f32 %v747
    %vm754 = vmor %vm752, %vm753
    %v755 = vsel %vm754, %v747, %v751
    %v756 = vand.u32 2147483647, %v746
    %vm757 = vcmp.eq.f32.partialorder %v756, 8.507059e+37
    %v758 = vand.u32 %v746, 2147483648
    %v759 = vor.u32 1.1754944e-38, %v758
    %v760 = vsel %vm757, %v759, %v755
    %v761 = vmul.f32 1.0, %v760
    %v762 = vtanh.pop %v742
    %764 = vrot.lane.b32.xlu0 %v717, 32
    %v765 = vpop.permute.xlu0 %764
    %v767 = vmul.f32 %v761, %v765
    %769 = vrot.lane.b32.xlu0 %v762, 64
    %v770 = vpop.permute.xlu0 %769
    %v772 = vmul.f32 %v761, %v770
    %774 = vrot.lane.b32.xlu0 %v772, 32
    %v775 = vpop.permute.xlu0 %774
    %v777 = vadd.f32 %v767, %v775
    %v778 = vtanh.pop %v777
    %780 = vrot.lane.b32.xlu0 %v778, 64
    %v781 = vpop.permute.xlu0 %780
    %v783 = vmul.f32 %v761, %v781
    %785 = vrot.lane.b32.xlu0 %v783, 32
    %v786 = vpop.permute.xlu0 %785
    %788 = vst.msk [vmem:[#allocation11] sm:$0x3] %vm197, %v786
    %v789 = vld [vmem:[#allocation2 + $0x2] sm:$0x3]
    %v790 = vsel %vm127, %v786, 0
    %792 = vmatpush.msra.mxu0 0.0
    %793 = vmatpush.msra.mxu0 0.0
    %794 = vmatpush.msra.mxu0 0.0
    %795 = vmatpush.msra.mxu0 0.0
    %796 = vmatpush.msra.mxu0 0.0
    %797 = vmatpush.msra.mxu0 0.0
    %798 = vmatpush.msra.mxu0 0.0
    %799 = vmatpush.msra.mxu0 0.0
    %800 = vmatpush.msra.mxu0 0.0
    %801 = vmatpush.msra.mxu0 0.0
    %802 = vmatpush.msra.mxu0 0.0
    %803 = vmatpush.msra.mxu0 0.0
    %804 = vmatpush.msra.mxu0 %v713
    %805 = vmatpush.msra.mxu0 %v712
    %806 = vmatpush.msra.mxu0 %v711
    %807 = vmatpush.msra.mxu0 %v710
    %808 = vmatmul.f32.gmra.mxu0 %v790
    %v809 = vpop.f32.mrf.mxu0
    %v810 = vadd.f32 0.0, %v809
    %811 = vdwg.mxu0
    %v812 = vadd.f32 %v789, %v810
    %v813 = vxor.u32 %v812, 2147483648
    %v814 = vmul.f32 %v813, 1.442695
    %v815 = vpow.pop %v814
    %v816 = vadd.f32 %v815, 1.0
    %v817 = vrcp.pop %v816
    %v818 = vmul.f32 %v816, %v817
    %v819 = vsub.f32 1.0, %v818
    %v820 = vmul.f32 %v817, %v819
    %v821 = vadd.f32 %v817, %v820
    %vm822 = vweird.f32 %v816
    %vm823 = vweird.f32 %v817
    %vm824 = vmor %vm822, %vm823
    %v825 = vsel %vm824, %v817, %v821
    %v826 = vand.u32 2147483647, %v816
    %vm827 = vcmp.eq.f32.partialorder %v826, 8.507059e+37
    %v828 = vand.u32 %v816, 2147483648
    %v829 = vor.u32 1.1754944e-38, %v828
    %v830 = vsel %vm827, %v829, %v825
    %v831 = vmul.f32 1.0, %v830
    %v832 = vtanh.pop %v812
    %v833 = vmul.f32 %v831, %v777
    %835 = vrot.lane.b32.xlu0 %v832, 64
    %v836 = vpop.permute.xlu0 %835
    %v838 = vmul.f32 %v831, %v836
    %840 = vrot.lane.b32.xlu0 %v838, 32
    %v841 = vpop.permute.xlu0 %840
    %v843 = vadd.f32 %v833, %v841
    %v844 = vtanh.pop %v843
    %846 = vrot.lane.b32.xlu0 %v844, 64
    %v847 = vpop.permute.xlu0 %846
    %v849 = vmul.f32 %v831, %v847
    %851 = vrot.lane.b32.xlu0 %v849, 32
    %v852 = vpop.permute.xlu0 %851
    %854 = vst.msk [vmem:[#allocation11 + $0x2] sm:$0x3] %vm197, %v852
    %v855 = vld [vmem:[#allocation2 + $0x4] sm:$0x3]
    %v856 = vsel %vm127, %v852, 0
    %858 = vmatpush.msra.mxu0 0.0
    %859 = vmatpush.msra.mxu0 0.0
    %860 = vmatpush.msra.mxu0 0.0
    %861 = vmatpush.msra.mxu0 0.0
    %862 = vmatpush.msra.mxu0 0.0
    %863 = vmatpush.msra.mxu0 0.0
    %864 = vmatpush.msra.mxu0 0.0
    %865 = vmatpush.msra.mxu0 0.0
    %866 = vmatpush.msra.mxu0 0.0
    %867 = vmatpush.msra.mxu0 0.0
    %868 = vmatpush.msra.mxu0 0.0
    %869 = vmatpush.msra.mxu0 0.0
    %870 = vmatpush.msra.mxu0 %v713
    %871 = vmatpush.msra.mxu0 %v712
    %872 = vmatpush.msra.mxu0 %v711
    %873 = vmatpush.msra.mxu0 %v710
    %874 = vmatmul.f32.gmra.mxu0 %v856
    %v875 = vpop.f32.mrf.mxu0
    %v876 = vadd.f32 0.0, %v875
    %877 = vdwg.mxu0
    %v878 = vadd.f32 %v855, %v876
    %v879 = vxor.u32 %v878, 2147483648
    %v880 = vmul.f32 %v879, 1.442695
    %v881 = vpow.pop %v880
    %v882 = vadd.f32 %v881, 1.0
    %v883 = vrcp.pop %v882
    %v884 = vmul.f32 %v882, %v883
    %v885 = vsub.f32 1.0, %v884
    %v886 = vmul.f32 %v883, %v885
    %v887 = vadd.f32 %v883, %v886
    %vm888 = vweird.f32 %v882
    %vm889 = vweird.f32 %v883
    %vm890 = vmor %vm888, %vm889
    %v891 = vsel %vm890, %v883, %v887
    %v892 = vand.u32 2147483647, %v882
    %vm893 = vcmp.eq.f32.partialorder %v892, 8.507059e+37
    %v894 = vand.u32 %v882, 2147483648
    %v895 = vor.u32 1.1754944e-38, %v894
    %v896 = vsel %vm893, %v895, %v891
    %v897 = vmul.f32 1.0, %v896
    %v898 = vtanh.pop %v878
    %v899 = vmul.f32 %v897, %v843
    %901 = vrot.lane.b32.xlu0 %v898, 64
    %v902 = vpop.permute.xlu0 %901
    %v904 = vmul.f32 %v897, %v902
    %906 = vrot.lane.b32.xlu0 %v904, 32
    %v907 = vpop.permute.xlu0 %906
    %v909 = vadd.f32 %v899, %v907
    %v910 = vtanh.pop %v909
    %912 = vrot.lane.b32.xlu0 %v910, 64
    %v913 = vpop.permute.xlu0 %912
    %v915 = vmul.f32 %v897, %v913
    %917 = vrot.lane.b32.xlu0 %v915, 32
    %v918 = vpop.permute.xlu0 %917
    %920 = vst.msk [vmem:[#allocation11 + $0x4] sm:$0x3] %vm197, %v918
    %v921 = vld [vmem:[#allocation2 + $0x6] sm:$0x3]
    %v922 = vsel %vm127, %v918, 0
    %924 = vmatpush.msra.mxu0 0.0
    %925 = vmatpush.msra.mxu0 0.0
    %926 = vmatpush.msra.mxu0 0.0
    %927 = vmatpush.msra.mxu0 0.0
    %928 = vmatpush.msra.mxu0 0.0
    %929 = vmatpush.msra.mxu0 0.0
    %930 = vmatpush.msra.mxu0 0.0
    %931 = vmatpush.msra.mxu0 0.0
    %932 = vmatpush.msra.mxu0 0.0
    %933 = vmatpush.msra.mxu0 0.0
    %934 = vmatpush.msra.mxu0 0.0
    %935 = vmatpush.msra.mxu0 0.0
    %936 = vmatpush.msra.mxu0 %v713
    %937 = vmatpush.msra.mxu0 %v712
    %938 = vmatpush.msra.mxu0 %v711
    %939 = vmatpush.msra.mxu0 %v710
    %940 = vmatmul.f32.gmra.mxu0 %v922
    %v941 = vpop.f32.mrf.mxu0
    %v942 = vadd.f32 0.0, %v941
    %943 = vdwg.mxu0
    %v944 = vadd.f32 %v921, %v942
    %v945 = vxor.u32 %v944, 2147483648
    %v946 = vmul.f32 %v945, 1.442695
    %v947 = vpow.pop %v946
    %v948 = vadd.f32 %v947, 1.0
    %v949 = vrcp.pop %v948
    %v950 = vmul.f32 %v948, %v949
    %v951 = vsub.f32 1.0, %v950
    %v952 = vmul.f32 %v949, %v951
    %v953 = vadd.f32 %v949, %v952
    %vm954 = vweird.f32 %v948
    %vm955 = vweird.f32 %v949
    %vm956 = vmor %vm954, %vm955
    %v957 = vsel %vm956, %v949, %v953
    %v958 = vand.u32 2147483647, %v948
    %vm959 = vcmp.eq.f32.partialorder %v958, 8.507059e+37
    %v960 = vand.u32 %v948, 2147483648
    %v961 = vor.u32 1.1754944e-38, %v960
    %v962 = vsel %vm959, %v961, %v957
    %v963 = vmul.f32 1.0, %v962
    %v964 = vtanh.pop %v944
    %v965 = vmul.f32 %v963, %v909
    %967 = vrot.lane.b32.xlu0 %v964, 64
    %v968 = vpop.permute.xlu0 %967
    %v970 = vmul.f32 %v963, %v968
    %972 = vrot.lane.b32.xlu0 %v970, 32
    %v973 = vpop.permute.xlu0 %972
    %v975 = vadd.f32 %v965, %v973
    %v976 = vtanh.pop %v975
    %978 = vrot.lane.b32.xlu0 %v976, 64
    %v979 = vpop.permute.xlu0 %978
    %v981 = vmul.f32 %v963, %v979
    %983 = vrot.lane.b32.xlu0 %v981, 32
    %v984 = vpop.permute.xlu0 %983
    %986 = vst.msk [vmem:[#allocation11 + $0x6] sm:$0x3] %vm197, %v984
    %v987 = vld [vmem:[#allocation2 + $0x8] sm:$0x3]
    %v988 = vsel %vm127, %v984, 0
    %990 = vmatpush.msra.mxu0 0.0
    %991 = vmatpush.msra.mxu0 0.0
    %992 = vmatpush.msra.mxu0 0.0
    %993 = vmatpush.msra.mxu0 0.0
    %994 = vmatpush.msra.mxu0 0.0
    %995 = vmatpush.msra.mxu0 0.0
    %996 = vmatpush.msra.mxu0 0.0
    %997 = vmatpush.msra.mxu0 0.0
    %998 = vmatpush.msra.mxu0 0.0
    %999 = vmatpush.msra.mxu0 0.0
    %1000 = vmatpush.msra.mxu0 0.0
    %1001 = vmatpush.msra.mxu0 0.0
    %1002 = vmatpush.msra.mxu0 %v713
    %1003 = vmatpush.msra.mxu0 %v712
    %1004 = vmatpush.msra.mxu0 %v711
    %1005 = vmatpush.msra.mxu0 %v710
    %1006 = vmatmul.f32.gmra.mxu0 %v988
    %v1007 = vpop.f32.mrf.mxu0
    %v1008 = vadd.f32 0.0, %v1007
    %1009 = vdwg.mxu0
    %v1010 = vadd.f32 %v987, %v1008
    %v1011 = vxor.u32 %v1010, 2147483648
    %v1012 = vmul.f32 %v1011, 1.442695
    %v1013 = vpow.pop %v1012
    %v1014 = vadd.f32 %v1013, 1.0
    %v1015 = vrcp.pop %v1014
    %v1016 = vmul.f32 %v1014, %v1015
    %v1017 = vsub.f32 1.0, %v1016
    %v1018 = vmul.f32 %v1015, %v1017
    %v1019 = vadd.f32 %v1015, %v1018
    %vm1020 = vweird.f32 %v1014
    %vm1021 = vweird.f32 %v1015
    %vm1022 = vmor %vm1020, %vm1021
    %v1023 = vsel %vm1022, %v1015, %v1019
    %v1024 = vand.u32 2147483647, %v1014
    %vm1025 = vcmp.eq.f32.partialorder %v1024, 8.507059e+37
    %v1026 = vand.u32 %v1014, 2147483648
    %v1027 = vor.u32 1.1754944e-38, %v1026
    %v1028 = vsel %vm1025, %v1027, %v1023
    %v1029 = vmul.f32 1.0, %v1028
    %v1030 = vtanh.pop %v1010
    %v1031 = vmul.f32 %v1029, %v975
    %1033 = vrot.lane.b32.xlu0 %v1030, 64
    %v1034 = vpop.permute.xlu0 %1033
    %v1036 = vmul.f32 %v1029, %v1034
    %1038 = vrot.lane.b32.xlu0 %v1036, 32
    %v1039 = vpop.permute.xlu0 %1038
    %v1041 = vadd.f32 %v1031, %v1039
    %v1042 = vtanh.pop %v1041
    %1044 = vrot.lane.b32.xlu0 %v1042, 64
    %v1045 = vpop.permute.xlu0 %1044
    %v1047 = vmul.f32 %v1029, %v1045
    %1049 = vrot.lane.b32.xlu0 %v1047, 32
    %v1050 = vpop.permute.xlu0 %1049
    %1052 = vst.msk [vmem:[#allocation11 + $0x8] sm:$0x3] %vm197, %v1050
    %v1053 = vld [vmem:[#allocation2 + $0xa] sm:$0x3]
    %v1054 = vsel %vm127, %v1050, 0
    %1056 = vmatpush.msra.mxu0 0.0
    %1057 = vmatpush.msra.mxu0 0.0
    %1058 = vmatpush.msra.mxu0 0.0
    %1059 = vmatpush.msra.mxu0 0.0
    %1060 = vmatpush.msra.mxu0 0.0
    %1061 = vmatpush.msra.mxu0 0.0
    %1062 = vmatpush.msra.mxu0 0.0
    %1063 = vmatpush.msra.mxu0 0.0
    %1064 = vmatpush.msra.mxu0 0.0
    %1065 = vmatpush.msra.mxu0 0.0
    %1066 = vmatpush.msra.mxu0 0.0
    %1067 = vmatpush.msra.mxu0 0.0
    %1068 = vmatpush.msra.mxu0 %v713
    %1069 = vmatpush.msra.mxu0 %v712
    %1070 = vmatpush.msra.mxu0 %v711
    %1071 = vmatpush.msra.mxu0 %v710
    %1072 = vmatmul.f32.gmra.mxu0 %v1054
    %v1073 = vpop.f32.mrf.mxu0
    %v1074 = vadd.f32 0.0, %v1073
    %1075 = vdwg.mxu0
    %v1076 = vadd.f32 %v1053, %v1074
    %v1077 = vxor.u32 %v1076, 2147483648
    %v1078 = vmul.f32 %v1077, 1.442695
    %v1079 = vpow.pop %v1078
    %v1080 = vadd.f32 %v1079, 1.0
    %v1081 = vrcp.pop %v1080
    %v1082 = vmul.f32 %v1080, %v1081
    %v1083 = vsub.f32 1.0, %v1082
    %v1084 = vmul.f32 %v1081, %v1083
    %v1085 = vadd.f32 %v1081, %v1084
    %vm1086 = vweird.f32 %v1080
    %vm1087 = vweird.f32 %v1081
    %vm1088 = vmor %vm1086, %vm1087
    %v1089 = vsel %vm1088, %v1081, %v1085
    %v1090 = vand.u32 2147483647, %v1080
    %vm1091 = vcmp.eq.f32.partialorder %v1090, 8.507059e+37
    %v1092 = vand.u32 %v1080, 2147483648
    %v1093 = vor.u32 1.1754944e-38, %v1092
    %v1094 = vsel %vm1091, %v1093, %v1089
    %v1095 = vmul.f32 1.0, %v1094
    %v1096 = vtanh.pop %v1076
    %v1097 = vmul.f32 %v1095, %v1041
    %1099 = vrot.lane.b32.xlu0 %v1096, 64
    %v1100 = vpop.permute.xlu0 %1099
    %v1102 = vmul.f32 %v1095, %v1100
    %1104 = vrot.lane.b32.xlu0 %v1102, 32
    %v1105 = vpop.permute.xlu0 %1104
    %v1107 = vadd.f32 %v1097, %v1105
    %v1108 = vtanh.pop %v1107
    %1110 = vrot.lane.b32.xlu0 %v1108, 64
    %v1111 = vpop.permute.xlu0 %1110
    %v1113 = vmul.f32 %v1095, %v1111
    %1115 = vrot.lane.b32.xlu0 %v1113, 32
    %v1116 = vpop.permute.xlu0 %1115
    %1118 = vst.msk [vmem:[#allocation11 + $0xa] sm:$0x3] %vm197, %v1116
    %v1119 = vld [vmem:[#allocation2 + $0xc] sm:$0x3]
    %v1120 = vsel %vm127, %v1116, 0
    %1122 = vmatpush.msra.mxu0 0.0
    %1123 = vmatpush.msra.mxu0 0.0
    %1124 = vmatpush.msra.mxu0 0.0
    %1125 = vmatpush.msra.mxu0 0.0
    %1126 = vmatpush.msra.mxu0 0.0
    %1127 = vmatpush.msra.mxu0 0.0
    %1128 = vmatpush.msra.mxu0 0.0
    %1129 = vmatpush.msra.mxu0 0.0
    %1130 = vmatpush.msra.mxu0 0.0
    %1131 = vmatpush.msra.mxu0 0.0
    %1132 = vmatpush.msra.mxu0 0.0
    %1133 = vmatpush.msra.mxu0 0.0
    %1134 = vmatpush.msra.mxu0 %v713
    %1135 = vmatpush.msra.mxu0 %v712
    %1136 = vmatpush.msra.mxu0 %v711
    %1137 = vmatpush.msra.mxu0 %v710
    %1138 = vmatmul.f32.gmra.mxu0 %v1120
    %v1139 = vpop.f32.mrf.mxu0
    %v1140 = vadd.f32 0.0, %v1139
    %1141 = vdwg.mxu0
    %v1142 = vadd.f32 %v1119, %v1140
    %v1143 = vxor.u32 %v1142, 2147483648
    %v1144 = vmul.f32 %v1143, 1.442695
    %v1145 = vpow.pop %v1144
    %v1146 = vadd.f32 %v1145, 1.0
    %v1147 = vrcp.pop %v1146
    %v1148 = vmul.f32 %v1146, %v1147
    %v1149 = vsub.f32 1.0, %v1148
    %v1150 = vmul.f32 %v1147, %v1149
    %v1151 = vadd.f32 %v1147, %v1150
    %vm1152 = vweird.f32 %v1146
    %vm1153 = vweird.f32 %v1147
    %vm1154 = vmor %vm1152, %vm1153
    %v1155 = vsel %vm1154, %v1147, %v1151
    %v1156 = vand.u32 2147483647, %v1146
    %vm1157 = vcmp.eq.f32.partialorder %v1156, 8.507059e+37
    %v1158 = vand.u32 %v1146, 2147483648
    %v1159 = vor.u32 1.1754944e-38, %v1158
    %v1160 = vsel %vm1157, %v1159, %v1155
    %v1161 = vmul.f32 1.0, %v1160
    %v1162 = vtanh.pop %v1142
    %v1163 = vmul.f32 %v1161, %v1107
    %1165 = vrot.lane.b32.xlu0 %v1162, 64
    %v1166 = vpop.permute.xlu0 %1165
    %v1168 = vmul.f32 %v1161, %v1166
    %1170 = vrot.lane.b32.xlu0 %v1168, 32
    %v1171 = vpop.permute.xlu0 %1170
    %v1173 = vadd.f32 %v1163, %v1171
    %v1174 = vtanh.pop %v1173
    %1176 = vrot.lane.b32.xlu0 %v1174, 64
    %v1177 = vpop.permute.xlu0 %1176
    %v1179 = vmul.f32 %v1161, %v1177
    %1181 = vrot.lane.b32.xlu0 %v1179, 32
    %v1182 = vpop.permute.xlu0 %1181
    %1184 = vst.msk [vmem:[#allocation11 + $0xc] sm:$0x3] %vm197, %v1182
    %v1185 = vld [vmem:[#allocation2 + $0xe] sm:$0x3]
    %v1186 = vsel %vm127, %v1182, 0
    %1188 = vmatpush.msra.mxu0 0.0
    %1189 = vmatpush.msra.mxu0 0.0
    %1190 = vmatpush.msra.mxu0 0.0
    %1191 = vmatpush.msra.mxu0 0.0
    %1192 = vmatpush.msra.mxu0 0.0
    %1193 = vmatpush.msra.mxu0 0.0
    %1194 = vmatpush.msra.mxu0 0.0
    %1195 = vmatpush.msra.mxu0 0.0
    %1196 = vmatpush.msra.mxu0 0.0
    %1197 = vmatpush.msra.mxu0 0.0
    %1198 = vmatpush.msra.mxu0 0.0
    %1199 = vmatpush.msra.mxu0 0.0
    %1200 = vmatpush.msra.mxu0 %v713
    %1201 = vmatpush.msra.mxu0 %v712
    %1202 = vmatpush.msra.mxu0 %v711
    %1203 = vmatpush.msra.mxu0 %v710
    %1204 = vmatmul.f32.gmra.mxu0 %v1186
    %v1205 = vpop.f32.mrf.mxu0
    %v1206 = vadd.f32 0.0, %v1205
    %1207 = vdwg.mxu0
    %v1208 = vadd.f32 %v1185, %v1206
    %v1209 = vxor.u32 %v1208, 2147483648
    %v1210 = vmul.f32 %v1209, 1.442695
    %v1211 = vpow.pop %v1210
    %v1212 = vadd.f32 %v1211, 1.0
    %v1213 = vrcp.pop %v1212
    %v1214 = vmul.f32 %v1212, %v1213
    %v1215 = vsub.f32 1.0, %v1214
    %v1216 = vmul.f32 %v1213, %v1215
    %v1217 = vadd.f32 %v1213, %v1216
    %vm1218 = vweird.f32 %v1212
    %vm1219 = vweird.f32 %v1213
    %vm1220 = vmor %vm1218, %vm1219
    %v1221 = vsel %vm1220, %v1213, %v1217
    %v1222 = vand.u32 2147483647, %v1212
    %vm1223 = vcmp.eq.f32.partialorder %v1222, 8.507059e+37
    %v1224 = vand.u32 %v1212, 2147483648
    %v1225 = vor.u32 1.1754944e-38, %v1224
    %v1226 = vsel %vm1223, %v1225, %v1221
    %v1227 = vmul.f32 1.0, %v1226
    %v1228 = vtanh.pop %v1208
    %v1229 = vmul.f32 %v1227, %v1173
    %1231 = vrot.lane.b32.xlu0 %v1228, 64
    %v1232 = vpop.permute.xlu0 %1231
    %v1234 = vmul.f32 %v1227, %v1232
    %1236 = vrot.lane.b32.xlu0 %v1234, 32
    %v1237 = vpop.permute.xlu0 %1236
    %v1239 = vadd.f32 %v1229, %v1237
    %v1240 = vtanh.pop %v1239
    %1242 = vrot.lane.b32.xlu0 %v1240, 64
    %v1243 = vpop.permute.xlu0 %1242
    %v1245 = vmul.f32 %v1227, %v1243
    %1247 = vrot.lane.b32.xlu0 %v1245, 32
    %v1248 = vpop.permute.xlu0 %1247
    %1250 = vst.msk [vmem:[#allocation11 + $0xe] sm:$0x3] %vm197, %v1248
    %s1251 = scalar_lea.vmem [#allocation12], 2
    %1252 = vst.msk [vmem:[%s1251] sm:$0x3] %vm197, %v1248
    %1254 = vrot.lane.b32.xlu0 %v1239, 96
    %v1255 = vpop.permute.xlu0 %1254
    %s1257 = scalar_lea.vmem [#allocation14], 2
    %1258 = vst.msk [vmem:[%s1257] sm:$0x3] %vm197, %v1255
    // Predicated region
    $region46: #{tpu_custom_call.1} parent=1 // pred_check
      _
    $region47: #{tpu_custom_call.1} parent=1 // pred_check_branch
      %1260 = sbr.rel (0) target = $region49
    $region48: #{tpu_custom_call.1} parent=1 // pred_region
      %1262 = vsyncadd [#allocation5], 0
      %s1263 = sshll.u32 [#allocation11], 4
      %s1264 = int_to_ptr.vmem [resolvable:$true] %s1263
      %s1265 = sshll.u32 %s7, 4
      %s1266 = int_to_ptr.hbm [resolvable:$true] %s1265
      %1271 = dma.vmem_to_hbm [thread:$0]  %s1264, 256, %s1266, [#allocation5], 128, 128, 8
    $region49: #{tpu_custom_call.1} parent=1 // pred_fallthru
      _
    // Predicated region
    $region50: #{tpu_custom_call.1} parent=1 // pred_check
      _
    $region51: #{tpu_custom_call.1} parent=1 // pred_check_branch
      %1273 = sbr.rel (0) target = $region53
    $region52: #{tpu_custom_call.1} parent=1 // pred_region
      %1275 = vsyncadd [#allocation13], 0
      %s1276 = sshll.u32 [#allocation12], 4
      %s1277 = int_to_ptr.vmem [resolvable:$true] %s1276
      %s1278 = sshll.u32 %s8, 4
      %s1279 = int_to_ptr.hbm [resolvable:$true] %s1278
      %1284 = dma.vmem_to_hbm [thread:$0]  %s1277, 64, %s1279, [#allocation13], 32, 32, 2
    $region53: #{tpu_custom_call.1} parent=1 // pred_fallthru
      _
    // Predicated region
    $region54: #{tpu_custom_call.1} parent=1 // pred_check
      _
    $region55: #{tpu_custom_call.1} parent=1 // pred_check_branch
      %1286 = sbr.rel (0) target = $region57
    $region56: #{tpu_custom_call.1} parent=1 // pred_region
      %1288 = vsyncadd [#allocation13], 0
      %s1289 = sshll.u32 [#allocation14], 4
      %s1290 = int_to_ptr.vmem [resolvable:$true] %s1289
      %s1291 = sshll.u32 %s9, 4
      %s1292 = int_to_ptr.hbm [resolvable:$true] %s1291
      %1297 = dma.vmem_to_hbm [thread:$0]  %s1290, 64, %s1292, [#allocation13], 32, 32, 2
    $region57: #{tpu_custom_call.1} parent=1 // pred_fallthru
      _
    // Predicated region
    $region58: #{tpu_custom_call.1} parent=1 // pred_check
      _
    $region59: #{tpu_custom_call.1} parent=1 // pred_check_branch
      %1299 = sbr.rel (0) target = $region61
    $region60: #{tpu_custom_call.1} parent=1 // pred_region
      %1301 = dma.done [#allocation5], 256
    $region61: #{tpu_custom_call.1} parent=1 // pred_fallthru
      _
    // Predicated region
    $region62: #{tpu_custom_call.1} parent=1 // pred_check
      _
    $region63: #{tpu_custom_call.1} parent=1 // pred_check_branch
      %1303 = sbr.rel (0) target = $region65
    $region64: #{tpu_custom_call.1} parent=1 // pred_region
      %1305 = dma.done [#allocation13], 64
    $region65: #{tpu_custom_call.1} parent=1 // pred_fallthru
      _
    // Predicated region
    $region66: #{tpu_custom_call.1} parent=1 // pred_check
      _
    $region67: #{tpu_custom_call.1} parent=1 // pred_check_branch
      %1307 = sbr.rel (0) target = $region69
    $region68: #{tpu_custom_call.1} parent=1 // pred_region
      %1309 = dma.done [#allocation13], 64
    $region69: #{tpu_custom_call.1} parent=1 // pred_fallthru
      _
    %1310 = vsyncpa [#allocation4], 1
    %1311 = vsyncpa [#allocation7], 1
    %1312 = vsyncpa [#allocation10], 1
    %1313 = vsyncpa [#allocation5], 1
    %1314 = vsyncpa [#allocation13], 1

</llo_original>
